<compile_context>
chip_gen: v5e
topology: v5e:2x2
jax: 0.10.0
libtpu: 0.0.40
codegen_flags: <defaults>
</compile_context>

<pallas_src>
import functools

import jax
import jax.numpy as jnp
from jax.experimental import pallas as pl
from jax.experimental.pallas import tpu as pltpu


# Stand-in sizes (real model: latent=hidden=2048).  Multiples of 128 so every matmul
# output is lane-dense.
LATENT_DIM = 128
HIDDEN_DIM = 128
NUM_CLASSES = 2
CLS_PAD = 128            # num_classes padded to a full lane width
IN_CHANNELS = 3
K_RAW = 3 * 3 * IN_CHANNELS   # 27
K_PAD = 32                    # zero-padded contraction dim (multiple of 16 for bf16)


@functools.lru_cache(maxsize=None)
def _vmem_limit_bytes():
    """Generation-dependent scoped-VMEM budget: ~3/4 of physical, capped at 96 MiB."""
    try:
        phys = pltpu.get_tpu_info().vmem_capacity_bytes
        return int(min(phys * 3 // 4, 96 * 1024 * 1024))
    except Exception:
        # 48 MiB is safe on every generation (v7x physical VMEM is 64 MiB).
        return 48 * 1024 * 1024


def _frames_per_block(n_frames, sp, max_cols=2048):
    """Frames per conv grid block: prefer lane-dense F*SP (mult of 128), keep >=2 grid
    steps when possible so megacore (v7x) gets work, and bound the column count."""
    divisors = [f for f in range(1, n_frames + 1)
                if n_frames % f == 0 and f * sp <= max_cols]
    if not divisors:
        return 1
    lane_dense = [f for f in divisors if (f * sp) % 128 == 0]
    pool = lane_dense if lane_dense else divisors
    multi_step = [f for f in pool if n_frames // f >= 2]
    return max(multi_step) if multi_step else max(pool)


# -----------------------------------------------------------------------------
# Kernel 1: multi-frame conv (as matmul) + bias + ReLU, fused AdaptiveAvgPool2d(1).
#   weights (Cout, K_pad) bf16, patches (K_pad, F*SP) bf16 -> one lane-dense matmul;
#   fmap tile written in bf16; per-frame spatial means computed in-kernel.
# -----------------------------------------------------------------------------
def _conv_pool_kernel(p_ref, w_ref, b_ref, fmap_ref, pool_ref, *, frames, sp):
    acc = jnp.dot(w_ref[...], p_ref[0],
                  preferred_element_type=jnp.float32)        # (Cout, F*SP) f32
    y = jnp.maximum(acc + b_ref[...], 0.0)                   # bias + ReLU (f32)
    fmap_ref[0] = y.astype(fmap_ref.dtype)                   # bf16 store, lane-dense
    # Fused AdaptiveAvgPool2d(1): per-frame mean over the SP spatial columns.
    for f in range(frames):
        pool_ref[0, :, f:f + 1] = jnp.mean(
            y[:, f * sp:(f + 1) * sp], axis=1, keepdims=True)


def conv3x3_s2_relu_pool(x_nchw, w, b):
    """x_nchw: (N, C, H, W) f32; w: (Cout, K_pad) bf16; b: (Cout, 1) f32.
    Returns fmap (N, Cout, Ho, Wo) bf16 and pooled (N, Cout) f32.  stride=2, pad=1."""
    N, C, H, W = x_nchw.shape
    Ho, Wo = (H + 1) // 2, (W + 1) // 2      # matches PyTorch floor((H-1)/2)+1, odd-safe
    SP = Ho * Wo
    cout, kpad = w.shape
    F = _frames_per_block(N, SP)
    Nb = N // F

    # im2col in XLA, directly in (K, spatial) order from the native NCHW input.
    # TODO(synk): replace with in-kernel halo-tile DMA to remove the ~10x read blowup.
    xp = jnp.pad(x_nchw, ((0, 0), (0, 0), (1, 1), (1, 1)))
    taps = [xp[:, :, ki:ki + 2 * Ho - 1:2, kj:kj + 2 * Wo - 1:2]
            for ki in range(3) for kj in range(3)]            # 9 x (N, C, Ho, Wo)
    p = jnp.concatenate(taps, axis=1).reshape(N, 9 * C, SP)   # (N, 9C, SP)
    p = jnp.pad(p, ((0, 0), (0, kpad - 9 * C), (0, 0))).astype(jnp.bfloat16)
    # Group F frames per block: columns ordered (frame, spatial) -> (Nb, K, F*SP).
    p = p.reshape(Nb, F, kpad, SP).transpose(0, 2, 1, 3).reshape(Nb, kpad, F * SP)

    kernel = functools.partial(_conv_pool_kernel, frames=F, sp=SP)
    fmap_blk, pooled_blk = pl.pallas_call(
        kernel,
        out_shape=(jax.ShapeDtypeStruct((Nb, cout, F * SP), jnp.bfloat16),
                   jax.ShapeDtypeStruct((Nb, cout, F), jnp.float32)),
        grid=(Nb,),
        in_specs=[
            pl.BlockSpec((1, kpad, F * SP), lambda i: (i, 0, 0)),  # per-block patches
            pl.BlockSpec((cout, kpad), lambda i: (0, 0)),          # resident weights
            pl.BlockSpec((cout, 1), lambda i: (0, 0)),             # resident bias
        ],
        out_specs=(pl.BlockSpec((1, cout, F * SP), lambda i: (i, 0, 0)),
                   pl.BlockSpec((1, cout, F), lambda i: (i, 0, 0))),
        compiler_params=pltpu.CompilerParams(
            dimension_semantics=("parallel",),
            vmem_limit_bytes=_vmem_limit_bytes()),
    )(p, w, b)

    # Un-block the fmap back to per-frame NCHW (cheap: fmap is bf16, tensor is small at
    # demo sizes; pooled tensor is tiny so its layout fix-up is negligible).
    fmap = (fmap_blk.reshape(Nb, cout, F, Ho, Wo)
            .transpose(0, 2, 1, 3, 4).reshape(N, cout, Ho, Wo))
    pooled = pooled_blk.transpose(0, 2, 1).reshape(N, cout)
    return fmap, pooled


# -----------------------------------------------------------------------------
# Kernel 2: generic tiled matmul (bf16 operands, f32 accumulate) — hoists the LSTM
#           input projection X @ W_ih out of the recurrence as one batched matmul.
# -----------------------------------------------------------------------------
def _matmul_kernel(x_ref, w_ref, o_ref):
    o_ref[...] = jnp.dot(x_ref[...], w_ref[...], preferred_element_type=jnp.float32)


def matmul_f32out(x_bf16, w_bf16, tm_max=512, tn_max=2048):
    M, D = x_bf16.shape
    Nout = w_bf16.shape[1]
    # Pad M to a multiple of 16 (bf16 sublane packing); tile M if large.
    if M > tm_max:
        Mp = pl.cdiv(M, tm_max) * tm_max
        tm = tm_max
    else:
        Mp = max(16, ((M + 15) // 16) * 16)
        tm = Mp
    if Mp != M:
        x_bf16 = jnp.pad(x_bf16, ((0, Mp - M), (0, 0)))
    # Tile Nout so the resident weight block stays bounded at real (2048, 8192) sizes.
    tn = Nout
    while tn > tn_max and tn % 2 == 0:
        tn //= 2

    out = pl.pallas_call(
        _matmul_kernel,
        out_shape=jax.ShapeDtypeStruct((Mp, Nout), jnp.float32),
        grid=(Mp // tm, Nout // tn),
        in_specs=[pl.BlockSpec((tm, D), lambda i, j: (i, 0)),
                  pl.BlockSpec((D, tn), lambda i, j: (0, j))],
        out_specs=pl.BlockSpec((tm, tn), lambda i, j: (i, j)),
        compiler_params=pltpu.CompilerParams(
            dimension_semantics=("parallel", "parallel"),
            vmem_limit_bytes=_vmem_limit_bytes()),
    )(x_bf16, w_bf16)
    return out[:M]


# -----------------------------------------------------------------------------
# Kernel 3: LSTM recurrence (bias=False, gates fused into one (H, 4H) matmul).
#           Single grid point, in-kernel fori_loop over time (bounded unroll).
#           The final Linear is hoisted out of the loop: h_last per step goes to a
#           (T, H) VMEM scratch; one (T,H)x(H,CLS_PAD) matmul + bias runs after.
#           Gate order matches PyTorch weight layout: i, f, g, o.
# -----------------------------------------------------------------------------
def _lstm_head_kernel(xw_ref, whh_ref, linw_ref, linb_ref, cls_ref, hlast_ref):
    T, B, G = xw_ref.shape
    H = G // 4
    whh = whh_ref[...]        # (H, 4H) bf16, loaded once

    def step(t, carry):
        h, c = carry
        # One fused gate matmul; input projection xw was precomputed outside the loop.
        gates = xw_ref[t] + jnp.dot(h.astype(jnp.bfloat16), whh,
                                    preferred_element_type=jnp.float32)   # (B, 4H) f32
        i_g = jax.nn.sigmoid(gates[:, 0 * H:1 * H])
        f_g = jax.nn.sigmoid(gates[:, 1 * H:2 * H])
        g_g = jnp.tanh(gates[:, 2 * H:3 * H])
        o_g = jax.nn.sigmoid(gates[:, 3 * H:4 * H])
        c_new = f_g * c + i_g * g_g
        h_new = o_g * jnp.tanh(c_new)
        # x_lstm[:, -1, :] -> hidden of the last LSTM-batch row at this time step.
        # Stash it; the Linear is applied once, after the serial recurrence.
        hlast_ref[pl.ds(t, 1), :] = h_new[B - 1:B, :]
        return h_new, c_new

    h0 = jnp.zeros((B, H), jnp.float32)
    c0 = jnp.zeros((B, H), jnp.float32)
    jax.lax.fori_loop(0, T, step, (h0, c0), unroll=min(T, 4))

    # Hoisted fused final Linear (Dropout is identity at eval), lane-dense output.
    cls_ref[...] = (jnp.dot(hlast_ref[...].astype(jnp.bfloat16), linw_ref[...],
                            preferred_element_type=jnp.float32) + linb_ref[...])


def lstm_head_forward(xw, w_hh, lin_w, lin_b):
    """xw: (T, B, 4H) f32 precomputed X@W_ih; returns (T, CLS_PAD) f32 logits."""
    T, B, G = xw.shape
    H = w_hh.shape[0]
    CP = lin_w.shape[1]
    cls = pl.pallas_call(
        _lstm_head_kernel,
        out_shape=jax.ShapeDtypeStruct((T, CP), jnp.float32),
        grid=(1,),
        in_specs=[
            pl.BlockSpec((T, B, G), lambda i: (0, 0, 0)),
            pl.BlockSpec((H, G), lambda i: (0, 0)),
            pl.BlockSpec((H, CP), lambda i: (0, 0)),
            pl.BlockSpec((1, CP), lambda i: (0, 0)),
        ],
        out_specs=pl.BlockSpec((T, CP), lambda i: (0, 0)),
        scratch_shapes=[pltpu.VMEM((T, H), jnp.float32)],
        compiler_params=pltpu.CompilerParams(
            dimension_semantics=("arbitrary",),
            vmem_limit_bytes=_vmem_limit_bytes()),
    )(xw, w_hh, lin_w, lin_b)
    return cls


# -----------------------------------------------------------------------------
# Parameters (deterministic, synthetic) and full forward
# -----------------------------------------------------------------------------
def init_params(key):
    ks = jax.random.split(key, 6)
    conv_w = 0.1 * jax.random.normal(ks[0], (LATENT_DIM, K_RAW), jnp.float32)
    conv_w = jnp.pad(conv_w, ((0, 0), (0, K_PAD - K_RAW))).astype(jnp.bfloat16)
    conv_b = 0.1 * jax.random.normal(ks[1], (LATENT_DIM, 1), jnp.float32)
    # LSTM has bias=False (4th positional nn.LSTM arg is `bias`, got False).
    # Gate-concatenated layouts: W_ih (D, 4H), W_hh (H, 4H), gate order i|f|g|o.
    w_ih = (0.1 * jax.random.normal(ks[2], (LATENT_DIM, 4 * HIDDEN_DIM),
                                    jnp.float32)).astype(jnp.bfloat16)
    w_hh = (0.1 * jax.random.normal(ks[3], (HIDDEN_DIM, 4 * HIDDEN_DIM),
                                    jnp.float32)).astype(jnp.bfloat16)
    lin_w = 0.1 * jax.random.normal(ks[4], (HIDDEN_DIM, NUM_CLASSES), jnp.float32)
    lin_w = jnp.pad(lin_w, ((0, 0), (0, CLS_PAD - NUM_CLASSES))).astype(jnp.bfloat16)
    lin_b = 0.1 * jax.random.normal(ks[5], (NUM_CLASSES,), jnp.float32)
    lin_b = jnp.pad(lin_b, (0, CLS_PAD - NUM_CLASSES)).reshape(1, CLS_PAD)
    return {"conv_w": conv_w, "conv_b": conv_b, "w_ih": w_ih, "w_hh": w_hh,
            "lin_w": lin_w, "lin_b": lin_b}


def deepfake_forward(params, x):
    """x: (batch, seq, c, h, w) float32, NCHW frames (PyTorch convention)."""
    bsz, seq, c, h, w = x.shape
    frames = x.reshape(bsz * seq, c, h, w)

    # Backbone stand-in + fused AdaptiveAvgPool2d(1).  fmap emitted in bf16.
    fmap, pooled = conv3x3_s2_relu_pool(frames, params["conv_w"], params["conv_b"])
    feats = pooled.reshape(bsz, seq, LATENT_DIM)            # (B, S, latent)

    # nn.LSTM with batch_first=False: time axis = axis 0 (batch), LSTM batch = seq axis.
    T, B = bsz, seq
    xw = matmul_f32out(feats.reshape(T * B, LATENT_DIM).astype(jnp.bfloat16),
                       params["w_ih"])                      # hoisted input projection
    xw = xw.reshape(T, B, 4 * HIDDEN_DIM)

    # Recurrence + (Dropout=identity at eval) + hoisted final Linear.
    out_padded = lstm_head_forward(xw, params["w_hh"], params["lin_w"], params["lin_b"])
    out = out_padded[:, :NUM_CLASSES]                       # (batch, num_classes)
    return fmap, out


if __name__ == "__main__":
    key = jax.random.PRNGKey(0)
    kx, kp = jax.random.split(key)

    batch, seq, c, h, w = 2, 4, IN_CHANNELS, 16, 16
    x = jax.random.normal(kx, (batch, seq, c, h, w), jnp.float32)
    params = init_params(kp)

    fwd = jax.jit(functools.partial(deepfake_forward, params))
    fmap, out = fwd(x)
    jax.block_until_ready(fmap)
    jax.block_until_ready(out)

    assert fmap.shape == (batch * seq, LATENT_DIM, (h + 1) // 2, (w + 1) // 2), fmap.shape
    assert out.shape == (batch, NUM_CLASSES), out.shape
    assert bool(jnp.all(jnp.isfinite(fmap.astype(jnp.float32))))
    assert bool(jnp.all(jnp.isfinite(out)))
    print("KERNEL_OK")
</pallas_src>

<mosaic_0001>
module attributes {stable_mosaic.version = 11 : i64} {
  func.func @_conv_pool_kernel(%arg0: i32, %arg1: memref<1x32x256xbf16, #tpu.memory_space<vmem>>, %arg2: memref<128x32xbf16, #tpu.memory_space<vmem>>, %arg3: memref<128x1xf32, #tpu.memory_space<vmem>>, %arg4: memref<1x128x256xbf16, #tpu.memory_space<vmem>>, %arg5: memref<1x128x4xf32, #tpu.memory_space<vmem>>) attributes {dimension_semantics = [#tpu.dimension_semantics<parallel>], iteration_bounds = array<i64: 2>, scalar_prefetch = 0 : i64, scratch_operands = 0 : i64, tpu.core_type = #tpu.core_type<tc>, window_params = [{transform_indices = @transform_0, window_bounds = array<i64: 1, 32, 256>}, {pipeline_mode = #tpu.pipeline_mode<synchronous>, transform_indices = @transform_1, window_bounds = array<i64: 128, 32>}, {pipeline_mode = #tpu.pipeline_mode<synchronous>, transform_indices = @transform_2, window_bounds = array<i64: 128, 1>}, {transform_indices = @transform_3, window_bounds = array<i64: 1, 128, 256>}, {transform_indices = @transform_4, window_bounds = array<i64: 1, 128, 4>}]} {
    %c0 = arith.constant 0 : index
    %c0_0 = arith.constant 0 : index
    %0 = vector.load %arg2[%c0, %c0_0] : memref<128x32xbf16, #tpu.memory_space<vmem>>, vector<128x32xbf16>
    %c0_1 = arith.constant 0 : index
    %c0_2 = arith.constant 0 : index
    %c0_3 = arith.constant 0 : index
    %1 = vector.load %arg1[%c0_1, %c0_2, %c0_3] : memref<1x32x256xbf16, #tpu.memory_space<vmem>>, vector<1x32x256xbf16>
    %2 = vector.shape_cast %1 : vector<1x32x256xbf16> to vector<32x256xbf16>
    %cst = arith.constant dense<0.000000e+00> : vector<128x256xf32>
    %3 = tpu.matmul %0, %2, %cst {dimension_numbers = #tpu.dot_dimension_numbers<[1], [0], [0], [1], [0, 0, 1, 1], [], []>} : vector<128x32xbf16>, vector<32x256xbf16>, vector<128x256xf32> -> vector<128x256xf32>
    %c0_4 = arith.constant 0 : index
    %c0_5 = arith.constant 0 : index
    %4 = vector.load %arg3[%c0_4, %c0_5] : memref<128x1xf32, #tpu.memory_space<vmem>>, vector<128x1xf32>
    %5 = vector.broadcast %4 : vector<128x1xf32> to vector<128x256xf32>
    %6 = arith.addf %3, %5 : vector<128x256xf32>
    %cst_6 = arith.constant 0.000000e+00 : f32
    %7 = vector.broadcast %cst_6 : f32 to vector<128x256xf32>
    %8 = arith.maximumf %6, %7 : vector<128x256xf32>
    %9 = arith.truncf %8 : vector<128x256xf32> to vector<128x256xbf16>
    %c0_7 = arith.constant 0 : index
    %c0_8 = arith.constant 0 : index
    %c0_9 = arith.constant 0 : index
    %10 = vector.load %arg4[%c0_7, %c0_8, %c0_9] : memref<1x128x256xbf16, #tpu.memory_space<vmem>>, vector<1x128x256xbf16>
    %11 = vector.shape_cast %10 : vector<1x128x256xbf16> to vector<128x256xbf16>
    %12 = vector.shape_cast %9 : vector<128x256xbf16> to vector<1x128x256xbf16>
    tpu.vector_store %arg4[%c0_7, %c0_8, %c0_9], %12 {strides = array<i32>} : memref<1x128x256xbf16, #tpu.memory_space<vmem>>, vector<1x128x256xbf16>,
    %13 = vector.extract_strided_slice %8 {offsets = [0, 0], sizes = [128, 64], strides = [1, 1]} : vector<128x256xf32> to vector<128x64xf32>
    %cst_10 = arith.constant dense<0.000000e+00> : vector<128xf32>
    %14 = vector.multi_reduction <add>, %13, %cst_10 [1] : vector<128x64xf32> to vector<128xf32>
    %15 = vector.shape_cast %14 : vector<128xf32> to vector<128x1xf32>
    %cst_11 = arith.constant 6.400000e+01 : f32
    %16 = vector.broadcast %cst_11 : f32 to vector<128x1xf32>
    %17 = arith.divf %15, %16 : vector<128x1xf32>
    %c0_12 = arith.constant 0 : index
    %c0_13 = arith.constant 0 : index
    %c0_14 = arith.constant 0 : index
    %18 = vector.load %arg5[%c0_12, %c0_13, %c0_14] : memref<1x128x4xf32, #tpu.memory_space<vmem>>, vector<1x128x1xf32>
    %19 = vector.shape_cast %18 : vector<1x128x1xf32> to vector<128x1xf32>
    %20 = vector.shape_cast %17 : vector<128x1xf32> to vector<1x128x1xf32>
    tpu.vector_store %arg5[%c0_12, %c0_13, %c0_14], %20 {strides = array<i32>} : memref<1x128x4xf32, #tpu.memory_space<vmem>>, vector<1x128x1xf32>,
    %21 = vector.extract_strided_slice %8 {offsets = [0, 64], sizes = [128, 64], strides = [1, 1]} : vector<128x256xf32> to vector<128x64xf32>
    %cst_15 = arith.constant dense<0.000000e+00> : vector<128xf32>
    %22 = vector.multi_reduction <add>, %21, %cst_15 [1] : vector<128x64xf32> to vector<128xf32>
    %23 = vector.shape_cast %22 : vector<128xf32> to vector<128x1xf32>
    %cst_16 = arith.constant 6.400000e+01 : f32
    %24 = vector.broadcast %cst_16 : f32 to vector<128x1xf32>
    %25 = arith.divf %23, %24 : vector<128x1xf32>
    %c0_17 = arith.constant 0 : index
    %c0_18 = arith.constant 0 : index
    %c1 = arith.constant 1 : index
    %26 = vector.load %arg5[%c0_17, %c0_18, %c1] : memref<1x128x4xf32, #tpu.memory_space<vmem>>, vector<1x128x1xf32>
    %27 = vector.shape_cast %26 : vector<1x128x1xf32> to vector<128x1xf32>
    %28 = vector.shape_cast %25 : vector<128x1xf32> to vector<1x128x1xf32>
    tpu.vector_store %arg5[%c0_17, %c0_18, %c1], %28 {strides = array<i32>} : memref<1x128x4xf32, #tpu.memory_space<vmem>>, vector<1x128x1xf32>,
    %29 = vector.extract_strided_slice %8 {offsets = [0, 128], sizes = [128, 64], strides = [1, 1]} : vector<128x256xf32> to vector<128x64xf32>
    %cst_19 = arith.constant dense<0.000000e+00> : vector<128xf32>
    %30 = vector.multi_reduction <add>, %29, %cst_19 [1] : vector<128x64xf32> to vector<128xf32>
    %31 = vector.shape_cast %30 : vector<128xf32> to vector<128x1xf32>
    %cst_20 = arith.constant 6.400000e+01 : f32
    %32 = vector.broadcast %cst_20 : f32 to vector<128x1xf32>
    %33 = arith.divf %31, %32 : vector<128x1xf32>
    %c0_21 = arith.constant 0 : index
    %c0_22 = arith.constant 0 : index
    %c2 = arith.constant 2 : index
    %34 = vector.load %arg5[%c0_21, %c0_22, %c2] : memref<1x128x4xf32, #tpu.memory_space<vmem>>, vector<1x128x1xf32>
    %35 = vector.shape_cast %34 : vector<1x128x1xf32> to vector<128x1xf32>
    %36 = vector.shape_cast %33 : vector<128x1xf32> to vector<1x128x1xf32>
    tpu.vector_store %arg5[%c0_21, %c0_22, %c2], %36 {strides = array<i32>} : memref<1x128x4xf32, #tpu.memory_space<vmem>>, vector<1x128x1xf32>,
    %37 = vector.extract_strided_slice %8 {offsets = [0, 192], sizes = [128, 64], strides = [1, 1]} : vector<128x256xf32> to vector<128x64xf32>
    %cst_23 = arith.constant dense<0.000000e+00> : vector<128xf32>
    %38 = vector.multi_reduction <add>, %37, %cst_23 [1] : vector<128x64xf32> to vector<128xf32>
    %39 = vector.shape_cast %38 : vector<128xf32> to vector<128x1xf32>
    %cst_24 = arith.constant 6.400000e+01 : f32
    %40 = vector.broadcast %cst_24 : f32 to vector<128x1xf32>
    %41 = arith.divf %39, %40 : vector<128x1xf32>
    %c0_25 = arith.constant 0 : index
    %c0_26 = arith.constant 0 : index
    %c3 = arith.constant 3 : index
    %42 = vector.load %arg5[%c0_25, %c0_26, %c3] : memref<1x128x4xf32, #tpu.memory_space<vmem>>, vector<1x128x1xf32>
    %43 = vector.shape_cast %42 : vector<1x128x1xf32> to vector<128x1xf32>
    %44 = vector.shape_cast %41 : vector<128x1xf32> to vector<1x128x1xf32>
    tpu.vector_store %arg5[%c0_25, %c0_26, %c3], %44 {strides = array<i32>} : memref<1x128x4xf32, #tpu.memory_space<vmem>>, vector<1x128x1xf32>,
    return
  }
  func.func @transform_0(%arg0: i32) -> (i32, i32, i32) {
    %c0_i32 = arith.constant 0 : i32
    %c0_i32_0 = arith.constant 0 : i32
    %c0_i32_1 = arith.constant 0 : i32
    return %arg0, %c0_i32, %c0_i32_0 : i32, i32, i32
  }
  func.func @transform_1(%arg0: i32) -> (i32, i32) {
    %c0_i32 = arith.constant 0 : i32
    %c0_i32_0 = arith.constant 0 : i32
    %c0_i32_1 = arith.constant 0 : i32
    return %c0_i32, %c0_i32_0 : i32, i32
  }
  func.func @transform_2(%arg0: i32) -> (i32, i32) {
    %c0_i32 = arith.constant 0 : i32
    %c0_i32_0 = arith.constant 0 : i32
    %c0_i32_1 = arith.constant 0 : i32
    return %c0_i32, %c0_i32_0 : i32, i32
  }
  func.func @transform_3(%arg0: i32) -> (i32, i32, i32) {
    %c0_i32 = arith.constant 0 : i32
    %c0_i32_0 = arith.constant 0 : i32
    %c0_i32_1 = arith.constant 0 : i32
    return %arg0, %c0_i32, %c0_i32_0 : i32, i32, i32
  }
  func.func @transform_4(%arg0: i32) -> (i32, i32, i32) {
    %c0_i32 = arith.constant 0 : i32
    %c0_i32_0 = arith.constant 0 : i32
    %c0_i32_1 = arith.constant 0 : i32
    return %arg0, %c0_i32, %c0_i32_0 : i32, i32, i32
  }
}

module attributes {stable_mosaic.version = 11 : i64} {
  func.func @_matmul_kernel(%arg0: i32, %arg1: i32, %arg2: memref<16x128xbf16, #tpu.memory_space<vmem>>, %arg3: memref<128x512xbf16, #tpu.memory_space<vmem>>, %arg4: memref<16x512xf32, #tpu.memory_space<vmem>>) attributes {dimension_semantics = [#tpu.dimension_semantics<parallel>, #tpu.dimension_semantics<parallel>], iteration_bounds = array<i64: 1, 1>, scalar_prefetch = 0 : i64, scratch_operands = 0 : i64, tpu.core_type = #tpu.core_type<tc>, window_params = [{transform_indices = @transform_0, window_bounds = array<i64: 16, 128>}, {transform_indices = @transform_1, window_bounds = array<i64: 128, 512>}, {transform_indices = @transform_2, window_bounds = array<i64: 16, 512>}]} {
    %c0 = arith.constant 0 : index
    %c0_0 = arith.constant 0 : index
    %0 = vector.load %arg2[%c0, %c0_0] : memref<16x128xbf16, #tpu.memory_space<vmem>>, vector<16x128xbf16>
    %c0_1 = arith.constant 0 : index
    %c0_2 = arith.constant 0 : index
    %1 = vector.load %arg3[%c0_1, %c0_2] : memref<128x512xbf16, #tpu.memory_space<vmem>>, vector<128x512xbf16>
    %cst = arith.constant dense<0.000000e+00> : vector<16x512xf32>
    %2 = tpu.matmul %0, %1, %cst {dimension_numbers = #tpu.dot_dimension_numbers<[1], [0], [0], [1], [0, 0, 1, 1], [], []>} : vector<16x128xbf16>, vector<128x512xbf16>, vector<16x512xf32> -> vector<16x512xf32>
    %c0_3 = arith.constant 0 : index
    %c0_4 = arith.constant 0 : index
    %3 = vector.load %arg4[%c0_3, %c0_4] : memref<16x512xf32, #tpu.memory_space<vmem>>, vector<16x512xf32>
    tpu.vector_store %arg4[%c0_3, %c0_4], %2 {strides = array<i32>} : memref<16x512xf32, #tpu.memory_space<vmem>>, vector<16x512xf32>,
    return
  }
  func.func @transform_0(%arg0: i32, %arg1: i32) -> (i32, i32) {
    %c0_i32 = arith.constant 0 : i32
    %c0_i32_0 = arith.constant 0 : i32
    return %arg0, %c0_i32 : i32, i32
  }
  func.func @transform_1(%arg0: i32, %arg1: i32) -> (i32, i32) {
    %c0_i32 = arith.constant 0 : i32
    %c0_i32_0 = arith.constant 0 : i32
    return %c0_i32, %arg1 : i32, i32
  }
  func.func @transform_2(%arg0: i32, %arg1: i32) -> (i32, i32) {
    %c0_i32 = arith.constant 0 : i32
    return %arg0, %arg1 : i32, i32
  }
}

module attributes {stable_mosaic.version = 11 : i64} {
  func.func @_lstm_head_kernel(%arg0: i32, %arg1: memref<2x4x512xf32, #tpu.memory_space<vmem>>, %arg2: memref<128x512xbf16, #tpu.memory_space<vmem>>, %arg3: memref<128x128xbf16, #tpu.memory_space<vmem>>, %arg4: memref<1x128xf32, #tpu.memory_space<vmem>>, %arg5: memref<2x128xf32, #tpu.memory_space<vmem>>, %arg6: memref<2x128xf32, #tpu.memory_space<vmem>>) attributes {dimension_semantics = [#tpu.dimension_semantics<arbitrary>], iteration_bounds = array<i64: 1>, scalar_prefetch = 0 : i64, scratch_operands = 1 : i64, tpu.core_type = #tpu.core_type<tc>, window_params = [{pipeline_mode = #tpu.pipeline_mode<synchronous>, transform_indices = @transform_0, window_bounds = array<i64: 2, 4, 512>}, {pipeline_mode = #tpu.pipeline_mode<synchronous>, transform_indices = @transform_1, window_bounds = array<i64: 128, 512>}, {pipeline_mode = #tpu.pipeline_mode<synchronous>, transform_indices = @transform_2, window_bounds = array<i64: 128, 128>}, {pipeline_mode = #tpu.pipeline_mode<synchronous>, transform_indices = @transform_3, window_bounds = array<i64: 1, 128>}, {pipeline_mode = #tpu.pipeline_mode<synchronous>, transform_indices = @transform_4, window_bounds = array<i64: 2, 128>}]} {
    %c0 = arith.constant 0 : index
    %c0_0 = arith.constant 0 : index
    %0 = vector.load %arg2[%c0, %c0_0] : memref<128x512xbf16, #tpu.memory_space<vmem>>, vector<128x512xbf16>
    %cst = arith.constant 0.000000e+00 : f32
    %1 = vector.broadcast %cst : f32 to vector<4x128xf32>
    %cst_1 = arith.constant 0.000000e+00 : f32
    %2 = vector.broadcast %cst_1 : f32 to vector<4x128xf32>
    %c0_i32 = arith.constant 0 : i32
    %3 = arith.index_cast %c0_i32 : i32 to index
    %c0_2 = arith.constant 0 : index
    %c0_3 = arith.constant 0 : index
    %4 = vector.load %arg1[%3, %c0_2, %c0_3] : memref<2x4x512xf32, #tpu.memory_space<vmem>>, vector<1x4x512xf32>
    %5 = vector.shape_cast %4 : vector<1x4x512xf32> to vector<4x512xf32>
    %6 = arith.truncf %1 : vector<4x128xf32> to vector<4x128xbf16>
    %cst_4 = arith.constant dense<0.000000e+00> : vector<4x512xf32>
    %7 = tpu.matmul %6, %0, %cst_4 {dimension_numbers = #tpu.dot_dimension_numbers<[1], [0], [0], [1], [0, 0, 1, 1], [], []>} : vector<4x128xbf16>, vector<128x512xbf16>, vector<4x512xf32> -> vector<4x512xf32>
    %8 = arith.addf %5, %7 : vector<4x512xf32>
    %9 = vector.extract_strided_slice %8 {offsets = [0, 0], sizes = [4, 128], strides = [1, 1]} : vector<4x512xf32> to vector<4x128xf32>
    %10 = arith.negf %9 : vector<4x128xf32>
    %11 = math.exp %10 : vector<4x128xf32>
    %cst_5 = arith.constant 1.000000e+00 : f32
    %12 = vector.broadcast %cst_5 : f32 to vector<4x128xf32>
    %13 = arith.addf %12, %11 : vector<4x128xf32>
    %14 = arith.divf %12, %13 : vector<4x128xf32>
    %15 = vector.extract_strided_slice %8 {offsets = [0, 128], sizes = [4, 128], strides = [1, 1]} : vector<4x512xf32> to vector<4x128xf32>
    %16 = arith.negf %15 : vector<4x128xf32>
    %17 = math.exp %16 : vector<4x128xf32>
    %cst_6 = arith.constant 1.000000e+00 : f32
    %18 = vector.broadcast %cst_6 : f32 to vector<4x128xf32>
    %19 = arith.addf %18, %17 : vector<4x128xf32>
    %20 = arith.divf %18, %19 : vector<4x128xf32>
    %21 = vector.extract_strided_slice %8 {offsets = [0, 256], sizes = [4, 128], strides = [1, 1]} : vector<4x512xf32> to vector<4x128xf32>
    %22 = math.tanh %21 : vector<4x128xf32>
    %23 = vector.extract_strided_slice %8 {offsets = [0, 384], sizes = [4, 128], strides = [1, 1]} : vector<4x512xf32> to vector<4x128xf32>
    %24 = arith.negf %23 : vector<4x128xf32>
    %25 = math.exp %24 : vector<4x128xf32>
    %cst_7 = arith.constant 1.000000e+00 : f32
    %26 = vector.broadcast %cst_7 : f32 to vector<4x128xf32>
    %27 = arith.addf %26, %25 : vector<4x128xf32>
    %28 = arith.divf %26, %27 : vector<4x128xf32>
    %29 = arith.mulf %20, %2 : vector<4x128xf32>
    %30 = arith.mulf %14, %22 : vector<4x128xf32>
    %31 = arith.addf %29, %30 : vector<4x128xf32>
    %32 = math.tanh %31 : vector<4x128xf32>
    %33 = arith.mulf %28, %32 : vector<4x128xf32>
    %34 = vector.extract_strided_slice %33 {offsets = [3, 0], sizes = [1, 128], strides = [1, 1]} : vector<4x128xf32> to vector<1x128xf32>
    %35 = arith.index_cast %c0_i32 : i32 to index
    %c0_8 = arith.constant 0 : index
    %36 = vector.load %arg6[%35, %c0_8] : memref<2x128xf32, #tpu.memory_space<vmem>>, vector<1x128xf32>
    tpu.vector_store %arg6[%35, %c0_8], %34 {strides = array<i32>} : memref<2x128xf32, #tpu.memory_space<vmem>>, vector<1x128xf32>,
    %c1_i32 = arith.constant 1 : i32
    %37 = arith.index_cast %c1_i32 : i32 to index
    %c0_9 = arith.constant 0 : index
    %c0_10 = arith.constant 0 : index
    %38 = vector.load %arg1[%37, %c0_9, %c0_10] : memref<2x4x512xf32, #tpu.memory_space<vmem>>, vector<1x4x512xf32>
    %39 = vector.shape_cast %38 : vector<1x4x512xf32> to vector<4x512xf32>
    %40 = arith.truncf %33 : vector<4x128xf32> to vector<4x128xbf16>
    %cst_11 = arith.constant dense<0.000000e+00> : vector<4x512xf32>
    %41 = tpu.matmul %40, %0, %cst_11 {dimension_numbers = #tpu.dot_dimension_numbers<[1], [0], [0], [1], [0, 0, 1, 1], [], []>} : vector<4x128xbf16>, vector<128x512xbf16>, vector<4x512xf32> -> vector<4x512xf32>
    %42 = arith.addf %39, %41 : vector<4x512xf32>
    %43 = vector.extract_strided_slice %42 {offsets = [0, 0], sizes = [4, 128], strides = [1, 1]} : vector<4x512xf32> to vector<4x128xf32>
    %44 = arith.negf %43 : vector<4x128xf32>
    %45 = math.exp %44 : vector<4x128xf32>
    %cst_12 = arith.constant 1.000000e+00 : f32
    %46 = vector.broadcast %cst_12 : f32 to vector<4x128xf32>
    %47 = arith.addf %46, %45 : vector<4x128xf32>
    %48 = arith.divf %46, %47 : vector<4x128xf32>
    %49 = vector.extract_strided_slice %42 {offsets = [0, 128], sizes = [4, 128], strides = [1, 1]} : vector<4x512xf32> to vector<4x128xf32>
    %50 = arith.negf %49 : vector<4x128xf32>
    %51 = math.exp %50 : vector<4x128xf32>
    %cst_13 = arith.constant 1.000000e+00 : f32
    %52 = vector.broadcast %cst_13 : f32 to vector<4x128xf32>
    %53 = arith.addf %52, %51 : vector<4x128xf32>
    %54 = arith.divf %52, %53 : vector<4x128xf32>
    %55 = vector.extract_strided_slice %42 {offsets = [0, 256], sizes = [4, 128], strides = [1, 1]} : vector<4x512xf32> to vector<4x128xf32>
    %56 = math.tanh %55 : vector<4x128xf32>
    %57 = vector.extract_strided_slice %42 {offsets = [0, 384], sizes = [4, 128], strides = [1, 1]} : vector<4x512xf32> to vector<4x128xf32>
    %58 = arith.negf %57 : vector<4x128xf32>
    %59 = math.exp %58 : vector<4x128xf32>
    %cst_14 = arith.constant 1.000000e+00 : f32
    %60 = vector.broadcast %cst_14 : f32 to vector<4x128xf32>
    %61 = arith.addf %60, %59 : vector<4x128xf32>
    %62 = arith.divf %60, %61 : vector<4x128xf32>
    %63 = arith.mulf %54, %31 : vector<4x128xf32>
    %64 = arith.mulf %48, %56 : vector<4x128xf32>
    %65 = arith.addf %63, %64 : vector<4x128xf32>
    %66 = math.tanh %65 : vector<4x128xf32>
    %67 = arith.mulf %62, %66 : vector<4x128xf32>
    %68 = vector.extract_strided_slice %67 {offsets = [3, 0], sizes = [1, 128], strides = [1, 1]} : vector<4x128xf32> to vector<1x128xf32>
    %69 = arith.index_cast %c1_i32 : i32 to index
    %c0_15 = arith.constant 0 : index
    %70 = vector.load %arg6[%69, %c0_15] : memref<2x128xf32, #tpu.memory_space<vmem>>, vector<1x128xf32>
    tpu.vector_store %arg6[%69, %c0_15], %68 {strides = array<i32>} : memref<2x128xf32, #tpu.memory_space<vmem>>, vector<1x128xf32>,
    %c2_i32 = arith.constant 2 : i32
    %c0_16 = arith.constant 0 : index
    %c0_17 = arith.constant 0 : index
    %71 = vector.load %arg6[%c0_16, %c0_17] : memref<2x128xf32, #tpu.memory_space<vmem>>, vector<2x128xf32>
    %72 = arith.truncf %71 : vector<2x128xf32> to vector<2x128xbf16>
    %c0_18 = arith.constant 0 : index
    %c0_19 = arith.constant 0 : index
    %73 = vector.load %arg3[%c0_18, %c0_19] : memref<128x128xbf16, #tpu.memory_space<vmem>>, vector<128x128xbf16>
    %cst_20 = arith.constant dense<0.000000e+00> : vector<2x128xf32>
    %74 = tpu.matmul %72, %73, %cst_20 {dimension_numbers = #tpu.dot_dimension_numbers<[1], [0], [0], [1], [0, 0, 1, 1], [], []>} : vector<2x128xbf16>, vector<128x128xbf16>, vector<2x128xf32> -> vector<2x128xf32>
    %c0_21 = arith.constant 0 : index
    %c0_22 = arith.constant 0 : index
    %75 = vector.load %arg4[%c0_21, %c0_22] : memref<1x128xf32, #tpu.memory_space<vmem>>, vector<1x128xf32>
    %76 = vector.broadcast %75 : vector<1x128xf32> to vector<2x128xf32>
    %77 = arith.addf %74, %76 : vector<2x128xf32>
    %c0_23 = arith.constant 0 : index
    %c0_24 = arith.constant 0 : index
    %78 = vector.load %arg5[%c0_23, %c0_24] : memref<2x128xf32, #tpu.memory_space<vmem>>, vector<2x128xf32>
    tpu.vector_store %arg5[%c0_23, %c0_24], %77 {strides = array<i32>} : memref<2x128xf32, #tpu.memory_space<vmem>>, vector<2x128xf32>,
    return
  }
  func.func @transform_0(%arg0: i32) -> (i32, i32, i32) {
    %c0_i32 = arith.constant 0 : i32
    %c0_i32_0 = arith.constant 0 : i32
    %c0_i32_1 = arith.constant 0 : i32
    %c0_i32_2 = arith.constant 0 : i32
    return %c0_i32, %c0_i32_0, %c0_i32_1 : i32, i32, i32
  }
  func.func @transform_1(%arg0: i32) -> (i32, i32) {
    %c0_i32 = arith.constant 0 : i32
    %c0_i32_0 = arith.constant 0 : i32
    %c0_i32_1 = arith.constant 0 : i32
    return %c0_i32, %c0_i32_0 : i32, i32
  }
  func.func @transform_2(%arg0: i32) -> (i32, i32) {
    %c0_i32 = arith.constant 0 : i32
    %c0_i32_0 = arith.constant 0 : i32
    %c0_i32_1 = arith.constant 0 : i32
    return %c0_i32, %c0_i32_0 : i32, i32
  }
  func.func @transform_3(%arg0: i32) -> (i32, i32) {
    %c0_i32 = arith.constant 0 : i32
    %c0_i32_0 = arith.constant 0 : i32
    %c0_i32_1 = arith.constant 0 : i32
    return %c0_i32, %c0_i32_0 : i32, i32
  }
  func.func @transform_4(%arg0: i32) -> (i32, i32) {
    %c0_i32 = arith.constant 0 : i32
    %c0_i32_0 = arith.constant 0 : i32
    %c0_i32_1 = arith.constant 0 : i32
    return %c0_i32, %c0_i32_0 : i32, i32
  }
}

</mosaic_0001>

<llo_original>
// kernel: deepfake_forward.4
$region0: #{deepfake_forward.4}
  #allocation0 [shape = 'u32[]', space=smem, size = 0x4, offset = 0x4, fixed_abs, tag = 'smem constant byte address 0x4 - core index']
  #allocation1 [shape = 'u32[72,128]{1,0:T(1,128)}', space=vmem, size = 0x9000, scoped, tag = 'internal scratch']
  %s0 = inlined_call_operand.vmem [shape: bf16[16,128], index: 0, kind: input, shape index: {}]
  %s1 = inlined_call_operand.vmem [shape: bf16[128,512], index: 1, kind: input, shape index: {}]
  %s2 = inlined_call_operand.vmem [shape: f32[16,512], index: 2, kind: output, shape index: {}]
  %s3 = sld [smem:[#allocation0]]
  $region18: #{deepfake_forward.4} parent=0
    _
  %s5 = ssub.s32 1, %s3
  %s6 = scalar_select 0, %s5, %s3
  // Predicated region
  $region2: #{deepfake_forward.4} parent=0 // pred_check
    _
  $region3: #{deepfake_forward.4} parent=0 // pred_check_branch
    %8 = sbr.rel (0) target = $region5
  $region4: #{deepfake_forward.4} parent=0 // pred_region
    _
  $region5: #{deepfake_forward.4} parent=0 // pred_fallthru
    _
  // Predicated region
  $region6: #{deepfake_forward.4} parent=0 // pred_check
    _
  $region7: #{deepfake_forward.4} parent=0 // pred_check_branch
    %10 = sbr.rel (0) target = $region9
  $region8: #{deepfake_forward.4} parent=0 // pred_region
    _
  $region9: #{deepfake_forward.4} parent=0 // pred_fallthru
    _
  %v11 = vld [vmem:[%s0] sm:$0xf]
  %v12 = vld [vmem:[%s0 + $0x4] sm:$0xf]
  %v13 = vld [vmem:[%s1] sm:$0xff]
  %v14 = vld [vmem:[%s1 + $0x8] sm:$0xff]
  %v15 = vld [vmem:[%s1 + $0x10] sm:$0xff]
  %v16 = vld [vmem:[%s1 + $0x18] sm:$0xff]
  %v17 = vld [vmem:[%s1 + $0x20] sm:$0xff]
  %v18 = vld [vmem:[%s1 + $0x28] sm:$0xff]
  %v19 = vld [vmem:[%s1 + $0x30] sm:$0xff]
  %v20 = vld [vmem:[%s1 + $0x38] sm:$0xff]
  %v21 = vld [vmem:[%s1 + $0x40] sm:$0xff]
  %v22 = vld [vmem:[%s1 + $0x48] sm:$0xff]
  %v23 = vld [vmem:[%s1 + $0x50] sm:$0xff]
  %v24 = vld [vmem:[%s1 + $0x58] sm:$0xff]
  %v25 = vld [vmem:[%s1 + $0x60] sm:$0xff]
  %v26 = vld [vmem:[%s1 + $0x68] sm:$0xff]
  %v27 = vld [vmem:[%s1 + $0x70] sm:$0xff]
  %v28 = vld [vmem:[%s1 + $0x78] sm:$0xff]
  %v29 = vld [vmem:[%s1 + $0x80] sm:$0xff]
  %v30 = vld [vmem:[%s1 + $0x88] sm:$0xff]
  %v31 = vld [vmem:[%s1 + $0x90] sm:$0xff]
  %v32 = vld [vmem:[%s1 + $0x98] sm:$0xff]
  %v33 = vld [vmem:[%s1 + $0xa0] sm:$0xff]
  %v34 = vld [vmem:[%s1 + $0xa8] sm:$0xff]
  %v35 = vld [vmem:[%s1 + $0xb0] sm:$0xff]
  %v36 = vld [vmem:[%s1 + $0xb8] sm:$0xff]
  %v37 = vld [vmem:[%s1 + $0xc0] sm:$0xff]
  %v38 = vld [vmem:[%s1 + $0xc8] sm:$0xff]
  %v39 = vld [vmem:[%s1 + $0xd0] sm:$0xff]
  %v40 = vld [vmem:[%s1 + $0xd8] sm:$0xff]
  %v41 = vld [vmem:[%s1 + $0xe0] sm:$0xff]
  %v42 = vld [vmem:[%s1 + $0xe8] sm:$0xff]
  %v43 = vld [vmem:[%s1 + $0xf0] sm:$0xff]
  %v44 = vld [vmem:[%s1 + $0xf8] sm:$0xff]
  %v47 = vunpack.c.l.b16 %v11
  %v48 = vunpack.c.l.b16 %v12
  %v49 = vpack.c.b16 %v48, %v47
  %v83 = vunpack.c.l.b16 %v13
  %v84 = vunpack.c.h.b16 %v13
  %v85 = vunpack.c.l.b16 %v14
  %v86 = vunpack.c.h.b16 %v14
  %v87 = vunpack.c.l.b16 %v15
  %v88 = vunpack.c.h.b16 %v15
  %v89 = vunpack.c.l.b16 %v16
  %v90 = vunpack.c.h.b16 %v16
  %v91 = vunpack.c.l.b16 %v17
  %v92 = vunpack.c.h.b16 %v17
  %v93 = vunpack.c.l.b16 %v18
  %v94 = vunpack.c.h.b16 %v18
  %v95 = vunpack.c.l.b16 %v19
  %v96 = vunpack.c.h.b16 %v19
  %v97 = vunpack.c.l.b16 %v20
  %v98 = vunpack.c.h.b16 %v20
  %v99 = vunpack.c.l.b16 %v21
  %v100 = vunpack.c.h.b16 %v21
  %v101 = vunpack.c.l.b16 %v22
  %v102 = vunpack.c.h.b16 %v22
  %v103 = vunpack.c.l.b16 %v23
  %v104 = vunpack.c.h.b16 %v23
  %v105 = vunpack.c.l.b16 %v24
  %v106 = vunpack.c.h.b16 %v24
  %v107 = vunpack.c.l.b16 %v25
  %v108 = vunpack.c.h.b16 %v25
  %v109 = vunpack.c.l.b16 %v26
  %v110 = vunpack.c.h.b16 %v26
  %v111 = vunpack.c.l.b16 %v27
  %v112 = vunpack.c.h.b16 %v27
  %v113 = vunpack.c.l.b16 %v28
  %v114 = vunpack.c.h.b16 %v28
  %v115 = vunpack.c.l.b16 %v29
  %v116 = vunpack.c.h.b16 %v29
  %v117 = vunpack.c.l.b16 %v30
  %v118 = vunpack.c.h.b16 %v30
  %v119 = vunpack.c.l.b16 %v31
  %v120 = vunpack.c.h.b16 %v31
  %v121 = vunpack.c.l.b16 %v32
  %v122 = vunpack.c.h.b16 %v32
  %v123 = vunpack.c.l.b16 %v33
  %v124 = vunpack.c.h.b16 %v33
  %v125 = vunpack.c.l.b16 %v34
  %v126 = vunpack.c.h.b16 %v34
  %v127 = vunpack.c.l.b16 %v35
  %v128 = vunpack.c.h.b16 %v35
  %v129 = vunpack.c.l.b16 %v36
  %v130 = vunpack.c.h.b16 %v36
  %v131 = vunpack.c.l.b16 %v37
  %v132 = vunpack.c.h.b16 %v37
  %v133 = vunpack.c.l.b16 %v38
  %v134 = vunpack.c.h.b16 %v38
  %v135 = vunpack.c.l.b16 %v39
  %v136 = vunpack.c.h.b16 %v39
  %v137 = vunpack.c.l.b16 %v40
  %v138 = vunpack.c.h.b16 %v40
  %v139 = vunpack.c.l.b16 %v41
  %v140 = vunpack.c.h.b16 %v41
  %v141 = vunpack.c.l.b16 %v42
  %v142 = vunpack.c.h.b16 %v42
  %v143 = vunpack.c.l.b16 %v43
  %v144 = vunpack.c.h.b16 %v43
  %v145 = vunpack.c.l.b16 %v44
  %v146 = vunpack.c.h.b16 %v44
  %v147 = vpack.c.b16 %v87, %v83
  %v148 = vpack.c.b16 %v88, %v84
  %v149 = vpack.c.b16 %v89, %v85
  %v150 = vpack.c.b16 %v90, %v86
  %v151 = vpack.c.b16 %v95, %v91
  %v152 = vpack.c.b16 %v96, %v92
  %v153 = vpack.c.b16 %v97, %v93
  %v154 = vpack.c.b16 %v98, %v94
  %v155 = vpack.c.b16 %v103, %v99
  %v156 = vpack.c.b16 %v104, %v100
  %v157 = vpack.c.b16 %v105, %v101
  %v158 = vpack.c.b16 %v106, %v102
  %v159 = vpack.c.b16 %v111, %v107
  %v160 = vpack.c.b16 %v112, %v108
  %v161 = vpack.c.b16 %v113, %v109
  %v162 = vpack.c.b16 %v114, %v110
  %v163 = vpack.c.b16 %v119, %v115
  %v164 = vpack.c.b16 %v120, %v116
  %v165 = vpack.c.b16 %v121, %v117
  %v166 = vpack.c.b16 %v122, %v118
  %v167 = vpack.c.b16 %v127, %v123
  %v168 = vpack.c.b16 %v128, %v124
  %v169 = vpack.c.b16 %v129, %v125
  %v170 = vpack.c.b16 %v130, %v126
  %v171 = vpack.c.b16 %v135, %v131
  %v172 = vpack.c.b16 %v136, %v132
  %v173 = vpack.c.b16 %v137, %v133
  %v174 = vpack.c.b16 %v138, %v134
  %v175 = vpack.c.b16 %v143, %v139
  %v176 = vpack.c.b16 %v144, %v140
  %v177 = vpack.c.b16 %v145, %v141
  %v178 = vpack.c.b16 %v146, %v142
  %211 = vmatpush.bf16.msra.mxu0 %v175
  %212 = vmatpush.bf16.msra.mxu0 %v171
  %213 = vmatpush.bf16.msra.mxu0 %v167
  %214 = vmatpush.bf16.msra.mxu0 %v163
  %215 = vmatpush.bf16.msra.mxu0 %v159
  %216 = vmatpush.bf16.msra.mxu0 %v155
  %217 = vmatpush.bf16.msra.mxu0 %v151
  %218 = vmatpush.bf16.msra.mxu0 %v147
  %219 = vmatmul.bf16.gmra.mxu0 %v49
  %v220 = vpop.f32.mrf.mxu0
  %v221 = vadd.f32 0.0, %v220
  %v222 = vpop.f32.mrf.mxu0
  %v223 = vadd.f32 0.0, %v222
  %224 = vdwg.mxu0
  %225 = vmatpush.bf16.msra.mxu0 %v176
  %226 = vmatpush.bf16.msra.mxu0 %v172
  %227 = vmatpush.bf16.msra.mxu0 %v168
  %228 = vmatpush.bf16.msra.mxu0 %v164
  %229 = vmatpush.bf16.msra.mxu0 %v160
  %230 = vmatpush.bf16.msra.mxu0 %v156
  %231 = vmatpush.bf16.msra.mxu0 %v152
  %232 = vmatpush.bf16.msra.mxu0 %v148
  %233 = vmatmul.bf16.gmra.mxu0 %v49
  %v234 = vpop.f32.mrf.mxu0
  %v235 = vadd.f32 0.0, %v234
  %v236 = vpop.f32.mrf.mxu0
  %v237 = vadd.f32 0.0, %v236
  %238 = vdwg.mxu0
  %239 = vmatpush.bf16.msra.mxu0 %v177
  %240 = vmatpush.bf16.msra.mxu0 %v173
  %241 = vmatpush.bf16.msra.mxu0 %v169
  %242 = vmatpush.bf16.msra.mxu0 %v165
  %243 = vmatpush.bf16.msra.mxu0 %v161
  %244 = vmatpush.bf16.msra.mxu0 %v157
  %245 = vmatpush.bf16.msra.mxu0 %v153
  %246 = vmatpush.bf16.msra.mxu0 %v149
  %247 = vmatmul.bf16.gmra.mxu0 %v49
  %v248 = vpop.f32.mrf.mxu0
  %v249 = vadd.f32 0.0, %v248
  %v250 = vpop.f32.mrf.mxu0
  %v251 = vadd.f32 0.0, %v250
  %252 = vdwg.mxu0
  %253 = vmatpush.bf16.msra.mxu0 %v178
  %254 = vmatpush.bf16.msra.mxu0 %v174
  %255 = vmatpush.bf16.msra.mxu0 %v170
  %256 = vmatpush.bf16.msra.mxu0 %v166
  %257 = vmatpush.bf16.msra.mxu0 %v162
  %258 = vmatpush.bf16.msra.mxu0 %v158
  %259 = vmatpush.bf16.msra.mxu0 %v154
  %260 = vmatpush.bf16.msra.mxu0 %v150
  %261 = vmatmul.bf16.gmra.mxu0 %v49
  %v262 = vpop.f32.mrf.mxu0
  %v263 = vadd.f32 0.0, %v262
  %v264 = vpop.f32.mrf.mxu0
  %v265 = vadd.f32 0.0, %v264
  %266 = vdwg.mxu0
  %267 = vst [vmem:[%s2] sm:$0xff] %v221
  %268 = vst [vmem:[%s2 + $0x8] sm:$0xff] %v235
  %269 = vst [vmem:[%s2 + $0x10] sm:$0xff] %v249
  %270 = vst [vmem:[%s2 + $0x18] sm:$0xff] %v263
  %271 = vst [vmem:[%s2 + $0x20] sm:$0xff] %v223
  %272 = vst [vmem:[%s2 + $0x28] sm:$0xff] %v237
  %273 = vst [vmem:[%s2 + $0x30] sm:$0xff] %v251
  %274 = vst [vmem:[%s2 + $0x38] sm:$0xff] %v265
  // Predicated region
  $region10: #{deepfake_forward.4} parent=0 // pred_check
    _
  $region11: #{deepfake_forward.4} parent=0 // pred_check_branch
    %276 = sbr.rel (0) target = $region13
  $region12: #{deepfake_forward.4} parent=0 // pred_region
    _
  $region13: #{deepfake_forward.4} parent=0 // pred_fallthru
    _
  // Predicated region
  $region14: #{deepfake_forward.4} parent=0 // pred_check
    _
  $region15: #{deepfake_forward.4} parent=0 // pred_check_branch
    %278 = sbr.rel (0) target = $region17
  $region16: #{deepfake_forward.4} parent=0 // pred_region
    _
  $region17: #{deepfake_forward.4} parent=0 // pred_fallthru
    _

// kernel: deepfake_forward.3
$region0: #{deepfake_forward.3}
  #allocation0 [shape = 'u32[]', space=smem, size = 0x4, offset = 0x4, fixed_abs, tag = 'smem constant byte address 0x4 - core index']
  #allocation1 [shape = 'u32[72,128]{1,0:T(1,128)}', space=vmem, size = 0x9000, scoped, tag = 'internal scratch']
  %s0 = inlined_call_operand.vmem [shape: bf16[2,32,256], index: 0, kind: input, shape index: {}]
  %s1 = inlined_call_operand.vmem [shape: bf16[128,32], index: 1, kind: input, shape index: {}]
  %s2 = inlined_call_operand.vmem [shape: f32[128,1], index: 2, kind: input, shape index: {}]
  %s3 = inlined_call_operand.vmem [shape: bf16[2,128,256], index: 3, kind: output, shape index: {0}]
  %s4 = inlined_call_operand.vmem [shape: f32[2,128,4], index: 4, kind: output, shape index: {1}]
  %5 = xla_tuple %s3, %s4
  %s6 = sld [smem:[#allocation0]]
  $region53: #{deepfake_forward.3} parent=0
    _
  %s8 = ssub.s32 1, %s6
  %s9 = scalar_select 0, %s8, %s6
  loop: start=0, step=1, limit=4
  $region2: #{deepfake_forward.3} parent=0 // loop_pre_header
    _
  $region3: #{deepfake_forward.3} parent=0 // loop_header
    %s11 = sphi 0, %s15
    %p12 = scmp.ge.s32.totalorder %s11, 4
    %s21 = sphi 0, %s23
    %s24 = sphi 0, %s21
    %s25 = sphi 0, %s24
    %s41 = sphi 0, %s25
    %s45 = sphi 0, %s45
    %s47 = sphi 0, %s45
    %s48 = sphi 0, %s47
    %s62 = sphi 0, %s48
    %s66 = sphi 0, %s66
    %s68 = sphi 0, %s66
    %s69 = sphi 0, %s68
    %s83 = sphi 0, %s69
    %s89 = sphi 0, %s91
    %s92 = sphi 0, %s89
    %s93 = sphi 0, %s92
    %s109 = sphi 0, %s93
    %s115 = sphi 0, %s117
    %s118 = sphi 0, %s115
    %s119 = sphi 0, %s118
    %s135 = sphi 0, %s119
  $region4: #{deepfake_forward.3} parent=0 // loop_header_branch
    %14 = sbr.rel (%p12) target = $region8
  $region5: #{deepfake_forward.3} parent=0 // loop_body
    %s16 = ssub.s32 %s11, 1
    %s17 = ssub.s32 %s11, 2
    %s18 = sadd.s32 %s11, 1
    %s19 = ssub.s32 %s11, %s18
    %p20 = scmp.eq.s32.totalorder %s19, 0
    %s22 = sadd.s32 %s21, 1
    %s23 = scalar_select %p20, %s21, %s22
    %p26 = pneg %p20
    %p27 = scmp.eq.s32.totalorder %s11, 1
    %p28 = por %p26, %p27
    %p29 = scmp.ne.s32.totalorder %s21, %s24
    %p30 = scmp.eq.s32.totalorder %s11, 0
    %p31 = por %p29, %p30
    %p32 = scmp.ne.s32.totalorder %s21, %s24
    %p33 = scmp.eq.s32.totalorder %s16, 1
    %p34 = por %p32, %p33
    %p35 = scmp.ne.s32.totalorder %s24, %s25
    %p36 = scmp.eq.s32.totalorder %s16, 0
    %p37 = por %p35, %p36
    %p38 = scmp.ne.s32.totalorder %s24, %s25
    %p39 = scmp.eq.s32.totalorder %s17, 1
    %p40 = por %p38, %p39
    %p42 = scmp.ne.s32.totalorder %s25, %s41
    %p43 = scmp.eq.s32.totalorder %s17, 0
    %p44 = por %p42, %p43
    %s46 = sadd.s32 %s45, 1
    %p49 = scmp.eq.s32.totalorder %s11, 1
    %p50 = scmp.ne.s32.totalorder %s45, %s47
    %p51 = scmp.eq.s32.totalorder %s11, 0
    %p52 = por %p50, %p51
    %p53 = scmp.ne.s32.totalorder %s45, %s47
    %p54 = scmp.eq.s32.totalorder %s16, 1
    %p55 = por %p53, %p54
    %p56 = scmp.ne.s32.totalorder %s47, %s48
    %p57 = scmp.eq.s32.totalorder %s16, 0
    %p58 = por %p56, %p57
    %p59 = scmp.ne.s32.totalorder %s47, %s48
    %p60 = scmp.eq.s32.totalorder %s17, 1
    %p61 = por %p59, %p60
    %p63 = scmp.ne.s32.totalorder %s48, %s62
    %p64 = scmp.eq.s32.totalorder %s17, 0
    %p65 = por %p63, %p64
    %s67 = sadd.s32 %s66, 1
    %p70 = scmp.eq.s32.totalorder %s11, 1
    %p71 = scmp.ne.s32.totalorder %s66, %s68
    %p72 = scmp.eq.s32.totalorder %s11, 0
    %p73 = por %p71, %p72
    %p74 = scmp.ne.s32.totalorder %s66, %s68
    %p75 = scmp.eq.s32.totalorder %s16, 1
    %p76 = por %p74, %p75
    %p77 = scmp.ne.s32.totalorder %s68, %s69
    %p78 = scmp.eq.s32.totalorder %s16, 0
    %p79 = por %p77, %p78
    %p80 = scmp.ne.s32.totalorder %s68, %s69
    %p81 = scmp.eq.s32.totalorder %s17, 1
    %p82 = por %p80, %p81
    %p84 = scmp.ne.s32.totalorder %s69, %s83
    %p85 = scmp.eq.s32.totalorder %s17, 0
    %p86 = por %p84, %p85
    %s87 = ssub.s32 %s11, %s18
    %p88 = scmp.eq.s32.totalorder %s87, 0
    %s90 = sadd.s32 %s89, 1
    %s91 = scalar_select %p88, %s89, %s90
    %p94 = pneg %p88
    %p95 = scmp.eq.s32.totalorder %s11, 1
    %p96 = por %p94, %p95
    %p97 = scmp.ne.s32.totalorder %s89, %s92
    %p98 = scmp.eq.s32.totalorder %s11, 0
    %p99 = por %p97, %p98
    %p100 = scmp.ne.s32.totalorder %s89, %s92
    %p101 = scmp.eq.s32.totalorder %s16, 1
    %p102 = por %p100, %p101
    %p103 = scmp.ne.s32.totalorder %s92, %s93
    %p104 = scmp.eq.s32.totalorder %s16, 0
    %p105 = por %p103, %p104
    %p106 = scmp.ne.s32.totalorder %s92, %s93
    %p107 = scmp.eq.s32.totalorder %s17, 1
    %p108 = por %p106, %p107
    %p110 = scmp.ne.s32.totalorder %s93, %s109
    %p111 = scmp.eq.s32.totalorder %s17, 0
    %p112 = por %p110, %p111
    %s113 = ssub.s32 %s11, %s18
    %p114 = scmp.eq.s32.totalorder %s113, 0
    %s116 = sadd.s32 %s115, 1
    %s117 = scalar_select %p114, %s115, %s116
    %p120 = pneg %p114
    %p121 = scmp.eq.s32.totalorder %s11, 1
    %p122 = por %p120, %p121
    %p123 = scmp.ne.s32.totalorder %s115, %s118
    %p124 = scmp.eq.s32.totalorder %s11, 0
    %p125 = por %p123, %p124
    %p126 = scmp.ne.s32.totalorder %s115, %s118
    %p127 = scmp.eq.s32.totalorder %s16, 1
    %p128 = por %p126, %p127
    %p129 = scmp.ne.s32.totalorder %s118, %s119
    %p130 = scmp.eq.s32.totalorder %s16, 0
    %p131 = por %p129, %p130
    %p132 = scmp.ne.s32.totalorder %s118, %s119
    %p133 = scmp.eq.s32.totalorder %s17, 1
    %p134 = por %p132, %p133
    %p136 = scmp.ne.s32.totalorder %s119, %s135
    %p137 = scmp.eq.s32.totalorder %s17, 0
    %p138 = por %p136, %p137
    %p139 = scmp.le.s32.totalorder 1, %s11
    %p140 = scmp.lt.s32.totalorder %s11, 3
    %p141 = pnand %p139, %p140
    %p142 = pneg %p141
    // Predicated region
    $region9: #{deepfake_forward.3} parent=5 // pred_check
      _
    $region10: #{deepfake_forward.3} parent=5 // pred_check_branch
      %144 = sbr.rel (%p141) target = $region12
    $region11: #{deepfake_forward.3} parent=5 // pred_region
      %s145 = ssub.s32 %s11, 1
      // Predicated region
      $region13: #{deepfake_forward.3} parent=11 // pred_check
        %p146 = pneg %p58
      $region14: #{deepfake_forward.3} parent=11 // pred_check_branch
        %148 = sbr.rel (%p146) target = $region16
      $region15: #{deepfake_forward.3} parent=11 // pred_region
        _
      $region16: #{deepfake_forward.3} parent=11 // pred_fallthru
        _
      // Predicated region
      $region17: #{deepfake_forward.3} parent=11 // pred_check
        %p149 = pneg %p79
      $region18: #{deepfake_forward.3} parent=11 // pred_check_branch
        %151 = sbr.rel (%p149) target = $region20
      $region19: #{deepfake_forward.3} parent=11 // pred_region
        _
      $region20: #{deepfake_forward.3} parent=11 // pred_fallthru
        _
    $region12: #{deepfake_forward.3} parent=5 // pred_fallthru
      _
    %p152 = scmp.lt.s32.totalorder %s11, 2
    // Predicated region
    $region21: #{deepfake_forward.3} parent=5 // pred_check
      %p153 = pneg %p152
    $region22: #{deepfake_forward.3} parent=5 // pred_check_branch
      %155 = sbr.rel (%p153) target = $region24
    $region23: #{deepfake_forward.3} parent=5 // pred_region
      // Predicated region
      $region25: #{deepfake_forward.3} parent=23 // pred_check
        %p156 = pneg %p31
      $region26: #{deepfake_forward.3} parent=23 // pred_check_branch
        %158 = sbr.rel (%p156) target = $region28
      $region27: #{deepfake_forward.3} parent=23 // pred_region
        %p159 = scmp.lt.s32.totalorder %s11, 1
        %s160 = scalar_select %p159, %s11, 1
        %s161 = smul.addr %s160, 8
        %s162 = smul.addr %s161, 4
        %s163 = scalar_lea.vmem %s0, %s162
      $region28: #{deepfake_forward.3} parent=23 // pred_fallthru
        _
    $region24: #{deepfake_forward.3} parent=5 // pred_fallthru
      _
    %p164 = scmp.le.s32.totalorder 1, %s11
    %p165 = scmp.lt.s32.totalorder %s11, 3
    %p166 = pnand %p164, %p165
    %p167 = pneg %p166
    // Predicated region
    $region29: #{deepfake_forward.3} parent=5 // pred_check
      _
    $region30: #{deepfake_forward.3} parent=5 // pred_check_branch
      %169 = sbr.rel (%p166) target = $region32
    $region31: #{deepfake_forward.3} parent=5 // pred_region
      %s170 = ssub.s32 %s11, 1
      %p171 = scmp.lt.s32.totalorder %s16, 1
      %s172 = scalar_select %p171, %s16, 1
      %s173 = smul.addr %s172, 8
      %s174 = smul.addr %s173, 4
      %s175 = scalar_lea.vmem %s0, %s174
      %p176 = pneg %p37
      %p177 = pneg %p34
      %p178 = pneg %p58
      %p179 = pneg %p55
      %p180 = pneg %p79
      %p181 = pneg %p76
      %p182 = pneg %p105
      %p183 = pneg %p102
      %p184 = scmp.lt.s32.totalorder %s16, 1
      %s185 = scalar_select %p184, %s16, 1
      %s186 = smul.addr %s185, 32
      %s187 = smul.addr %s186, 4
      %s188 = scalar_lea.vmem %s3, %s187
      %p189 = pneg %p131
      %p190 = pneg %p128
      %p191 = scmp.lt.s32.totalorder %s16, 1
      %s192 = scalar_select %p191, %s16, 1
      %s193 = smul.addr %s192, 16
      %s194 = smul.addr %s193, 8
      %s195 = scalar_lea.vmem %s4, %s194
      %p196 = scmp.lt.s32.totalorder %s16, 1
      %s197 = scalar_select %p196, %s16, 1
      %s198 = smul.addr %s197, 8
      %s199 = smul.addr %s198, 4
      %s200 = scalar_lea.vmem %s0, %s199
      %p201 = scmp.lt.s32.totalorder %s16, 1
      %s202 = scalar_select %p201, %s16, 1
      %s203 = smul.addr %s202, 32
      %s204 = smul.addr %s203, 4
      %s205 = scalar_lea.vmem %s3, %s204
      %p206 = scmp.lt.s32.totalorder %s16, 1
      %s207 = scalar_select %p206, %s16, 1
      %s208 = smul.addr %s207, 16
      %s209 = smul.addr %s208, 8
      %s210 = scalar_lea.vmem %s4, %s209
      %v212 = vld [vmem:[%s1] sm:$0xf]
      %v213 = vld [vmem:[%s1 + $0x4] sm:$0xf]
      %v214 = vld [vmem:[%s1 + $0x8] sm:$0xf]
      %v215 = vld [vmem:[%s1 + $0xc] sm:$0xf]
      %v216 = vld [vmem:[%s1 + $0x10] sm:$0xf]
      %v217 = vld [vmem:[%s1 + $0x14] sm:$0xf]
      %v218 = vld [vmem:[%s1 + $0x18] sm:$0xf]
      %v219 = vld [vmem:[%s1 + $0x1c] sm:$0xf]
      %v220 = vld [vmem:[%s1 + $0x20] sm:$0xf]
      %v221 = vld [vmem:[%s1 + $0x24] sm:$0xf]
      %v222 = vld [vmem:[%s1 + $0x28] sm:$0xf]
      %v223 = vld [vmem:[%s1 + $0x2c] sm:$0xf]
      %v224 = vld [vmem:[%s1 + $0x30] sm:$0xf]
      %v225 = vld [vmem:[%s1 + $0x34] sm:$0xf]
      %v226 = vld [vmem:[%s1 + $0x38] sm:$0xf]
      %v227 = vld [vmem:[%s1 + $0x3c] sm:$0xf]
      %v228 = vld [vmem:[%s200] sm:$0xff]
      %v229 = vld [vmem:[%s200 + $0x8] sm:$0xff]
      %v230 = vld [vmem:[%s200 + $0x10] sm:$0xff]
      %v231 = vld [vmem:[%s200 + $0x18] sm:$0xff]
      %v232 = vld [vmem:[%s2] sm:$0xff]
      %v233 = vld [vmem:[%s2 + $0x8] sm:$0xff]
      %v234 = vld [vmem:[%s2 + $0x10] sm:$0xff]
      %v235 = vld [vmem:[%s2 + $0x18] sm:$0xff]
      %v236 = vld [vmem:[%s2 + $0x20] sm:$0xff]
      %v237 = vld [vmem:[%s2 + $0x28] sm:$0xff]
      %v238 = vld [vmem:[%s2 + $0x30] sm:$0xff]
      %v239 = vld [vmem:[%s2 + $0x38] sm:$0xff]
      %v240 = vld [vmem:[%s2 + $0x40] sm:$0xff]
      %v241 = vld [vmem:[%s2 + $0x48] sm:$0xff]
      %v242 = vld [vmem:[%s2 + $0x50] sm:$0xff]
      %v243 = vld [vmem:[%s2 + $0x58] sm:$0xff]
      %v244 = vld [vmem:[%s2 + $0x60] sm:$0xff]
      %v245 = vld [vmem:[%s2 + $0x68] sm:$0xff]
      %v246 = vld [vmem:[%s2 + $0x70] sm:$0xff]
      %v247 = vld [vmem:[%s2 + $0x78] sm:$0xff]
      %249 = vset.pattern.permute.xlu0 0
      %250 = vperm.xlu0 %249, %v232
      %v251 = vpop.permute.xlu0 %250
      %254 = vset.pattern.permute.xlu0 0
      %255 = vperm.xlu0 %254, %v233
      %v256 = vpop.permute.xlu0 %255
      %259 = vset.pattern.permute.xlu0 0
      %260 = vperm.xlu0 %259, %v234
      %v261 = vpop.permute.xlu0 %260
      %264 = vset.pattern.permute.xlu0 0
      %265 = vperm.xlu0 %264, %v235
      %v266 = vpop.permute.xlu0 %265
      %269 = vset.pattern.permute.xlu0 0
      %270 = vperm.xlu0 %269, %v236
      %v271 = vpop.permute.xlu0 %270
      %274 = vset.pattern.permute.xlu0 0
      %275 = vperm.xlu0 %274, %v237
      %v276 = vpop.permute.xlu0 %275
      %279 = vset.pattern.permute.xlu0 0
      %280 = vperm.xlu0 %279, %v238
      %v281 = vpop.permute.xlu0 %280
      %284 = vset.pattern.permute.xlu0 0
      %285 = vperm.xlu0 %284, %v239
      %v286 = vpop.permute.xlu0 %285
      %289 = vset.pattern.permute.xlu0 0
      %290 = vperm.xlu0 %289, %v240
      %v291 = vpop.permute.xlu0 %290
      %294 = vset.pattern.permute.xlu0 0
      %295 = vperm.xlu0 %294, %v241
      %v296 = vpop.permute.xlu0 %295
      %299 = vset.pattern.permute.xlu0 0
      %300 = vperm.xlu0 %299, %v242
      %v301 = vpop.permute.xlu0 %300
      %304 = vset.pattern.permute.xlu0 0
      %305 = vperm.xlu0 %304, %v243
      %v306 = vpop.permute.xlu0 %305
      %309 = vset.pattern.permute.xlu0 0
      %310 = vperm.xlu0 %309, %v244
      %v311 = vpop.permute.xlu0 %310
      %314 = vset.pattern.permute.xlu0 0
      %315 = vperm.xlu0 %314, %v245
      %v316 = vpop.permute.xlu0 %315
      %319 = vset.pattern.permute.xlu0 0
      %320 = vperm.xlu0 %319, %v246
      %v321 = vpop.permute.xlu0 %320
      %324 = vset.pattern.permute.xlu0 0
      %325 = vperm.xlu0 %324, %v247
      %v326 = vpop.permute.xlu0 %325
      %v344 = vunpack.c.l.b16 %v212
      %v345 = vunpack.c.l.b16 %v213
      %v346 = vunpack.c.l.b16 %v214
      %v347 = vunpack.c.l.b16 %v215
      %v348 = vunpack.c.l.b16 %v216
      %v349 = vunpack.c.l.b16 %v217
      %v350 = vunpack.c.l.b16 %v218
      %v351 = vunpack.c.l.b16 %v219
      %v352 = vunpack.c.l.b16 %v220
      %v353 = vunpack.c.l.b16 %v221
      %v354 = vunpack.c.l.b16 %v222
      %v355 = vunpack.c.l.b16 %v223
      %v356 = vunpack.c.l.b16 %v224
      %v357 = vunpack.c.l.b16 %v225
      %v358 = vunpack.c.l.b16 %v226
      %v359 = vunpack.c.l.b16 %v227
      %v360 = vpack.c.b16 %v345, %v344
      %v361 = vpack.c.b16 %v347, %v346
      %v362 = vpack.c.b16 %v349, %v348
      %v363 = vpack.c.b16 %v351, %v350
      %v364 = vpack.c.b16 %v353, %v352
      %v365 = vpack.c.b16 %v355, %v354
      %v366 = vpack.c.b16 %v357, %v356
      %v367 = vpack.c.b16 %v359, %v358
      %v372 = vunpack.c.l.b16 %v228
      %v373 = vunpack.c.h.b16 %v228
      %v374 = vunpack.c.l.b16 %v229
      %v375 = vunpack.c.h.b16 %v229
      %v376 = vunpack.c.l.b16 %v230
      %v377 = vunpack.c.h.b16 %v230
      %v378 = vunpack.c.l.b16 %v231
      %v379 = vunpack.c.h.b16 %v231
      %v380 = vpack.c.b16 %v374, %v372
      %v381 = vpack.c.b16 %v375, %v373
      %v382 = vpack.c.b16 %v378, %v376
      %v383 = vpack.c.b16 %v379, %v377
      %vm388 = vcmask 261120
      %v390 = vsel %vm388, %v360, 0
      %v393 = vsel %vm388, %v361, 0
      %v396 = vsel %vm388, %v362, 0
      %v399 = vsel %vm388, %v363, 0
      %v402 = vsel %vm388, %v364, 0
      %v405 = vsel %vm388, %v365, 0
      %v408 = vsel %vm388, %v366, 0
      %v411 = vsel %vm388, %v367, 0
      %413 = vmatpush.bf16.msra.mxu0 0
      %414 = vmatpush.bf16.msra.mxu0 0
      %415 = vmatpush.bf16.msra.mxu0 0
      %416 = vmatpush.bf16.msra.mxu0 0
      %417 = vmatpush.bf16.msra.mxu0 0
      %418 = vmatpush.bf16.msra.mxu0 0
      %419 = vmatpush.bf16.msra.mxu0 %v382
      %420 = vmatpush.bf16.msra.mxu0 %v380
      %421 = vmatmul.bf16.gmra.mxu0 %v390
      %v422 = vpop.f32.mrf.mxu0
      %v423 = vadd.f32 %v251, %v422
      %v424 = vpop.f32.mrf.mxu0
      %v425 = vadd.f32 %v256, %v424
      %426 = vmatmul.bf16.gmra.mxu0 %v393
      %v427 = vpop.f32.mrf.mxu0
      %v428 = vadd.f32 %v261, %v427
      %v429 = vpop.f32.mrf.mxu0
      %v430 = vadd.f32 %v266, %v429
      %431 = vmatmul.bf16.gmra.mxu0 %v396
      %v432 = vpop.f32.mrf.mxu0
      %v433 = vadd.f32 %v271, %v432
      %v434 = vpop.f32.mrf.mxu0
      %v435 = vadd.f32 %v276, %v434
      %436 = vmatmul.bf16.gmra.mxu0 %v399
      %v437 = vpop.f32.mrf.mxu0
      %v438 = vadd.f32 %v281, %v437
      %v439 = vpop.f32.mrf.mxu0
      %v440 = vadd.f32 %v286, %v439
      %441 = vmatmul.bf16.gmra.mxu0 %v402
      %v442 = vpop.f32.mrf.mxu0
      %v443 = vadd.f32 %v291, %v442
      %v444 = vpop.f32.mrf.mxu0
      %v445 = vadd.f32 %v296, %v444
      %446 = vmatmul.bf16.gmra.mxu0 %v405
      %v447 = vpop.f32.mrf.mxu0
      %v448 = vadd.f32 %v301, %v447
      %v449 = vpop.f32.mrf.mxu0
      %v450 = vadd.f32 %v306, %v449
      %451 = vmatmul.bf16.gmra.mxu0 %v408
      %v452 = vpop.f32.mrf.mxu0
      %v453 = vadd.f32 %v311, %v452
      %v454 = vpop.f32.mrf.mxu0
      %v455 = vadd.f32 %v316, %v454
      %456 = vmatmul.bf16.gmra.mxu0 %v411
      %v457 = vpop.f32.mrf.mxu0
      %v458 = vadd.f32 %v321, %v457
      %v459 = vpop.f32.mrf.mxu0
      %v460 = vadd.f32 %v326, %v459
      %461 = vdwg.mxu0
      %462 = vmatpush.bf16.msra.mxu0 0
      %463 = vmatpush.bf16.msra.mxu0 0
      %464 = vmatpush.bf16.msra.mxu0 0
      %465 = vmatpush.bf16.msra.mxu0 0
      %466 = vmatpush.bf16.msra.mxu0 0
      %467 = vmatpush.bf16.msra.mxu0 0
      %468 = vmatpush.bf16.msra.mxu0 %v383
      %469 = vmatpush.bf16.msra.mxu0 %v381
      %470 = vmatmul.bf16.gmra.mxu0 %v390
      %v471 = vpop.f32.mrf.mxu0
      %v472 = vadd.f32 %v251, %v471
      %v473 = vpop.f32.mrf.mxu0
      %v474 = vadd.f32 %v256, %v473
      %475 = vmatmul.bf16.gmra.mxu0 %v393
      %v476 = vpop.f32.mrf.mxu0
      %v477 = vadd.f32 %v261, %v476
      %v478 = vpop.f32.mrf.mxu0
      %v479 = vadd.f32 %v266, %v478
      %480 = vmatmul.bf16.gmra.mxu0 %v396
      %v481 = vpop.f32.mrf.mxu0
      %v482 = vadd.f32 %v271, %v481
      %v483 = vpop.f32.mrf.mxu0
      %v484 = vadd.f32 %v276, %v483
      %485 = vmatmul.bf16.gmra.mxu0 %v399
      %v486 = vpop.f32.mrf.mxu0
      %v487 = vadd.f32 %v281, %v486
      %v488 = vpop.f32.mrf.mxu0
      %v489 = vadd.f32 %v286, %v488
      %490 = vmatmul.bf16.gmra.mxu0 %v402
      %v491 = vpop.f32.mrf.mxu0
      %v492 = vadd.f32 %v291, %v491
      %v493 = vpop.f32.mrf.mxu0
      %v494 = vadd.f32 %v296, %v493
      %495 = vmatmul.bf16.gmra.mxu0 %v405
      %v496 = vpop.f32.mrf.mxu0
      %v497 = vadd.f32 %v301, %v496
      %v498 = vpop.f32.mrf.mxu0
      %v499 = vadd.f32 %v306, %v498
      %500 = vmatmul.bf16.gmra.mxu0 %v408
      %v501 = vpop.f32.mrf.mxu0
      %v502 = vadd.f32 %v311, %v501
      %v503 = vpop.f32.mrf.mxu0
      %v504 = vadd.f32 %v316, %v503
      %505 = vmatmul.bf16.gmra.mxu0 %v411
      %v506 = vpop.f32.mrf.mxu0
      %v507 = vadd.f32 %v321, %v506
      %v508 = vpop.f32.mrf.mxu0
      %v509 = vadd.f32 %v326, %v508
      %510 = vdwg.mxu0
      %v511 = vmax.f32 %v423, 0.0
      %v512 = vmax.f32 %v472, 0.0
      %v513 = vmax.f32 %v425, 0.0
      %v514 = vmax.f32 %v474, 0.0
      %v515 = vmax.f32 %v428, 0.0
      %v516 = vmax.f32 %v477, 0.0
      %v517 = vmax.f32 %v430, 0.0
      %v518 = vmax.f32 %v479, 0.0
      %v519 = vmax.f32 %v433, 0.0
      %v520 = vmax.f32 %v482, 0.0
      %v521 = vmax.f32 %v435, 0.0
      %v522 = vmax.f32 %v484, 0.0
      %v523 = vmax.f32 %v438, 0.0
      %v524 = vmax.f32 %v487, 0.0
      %v525 = vmax.f32 %v440, 0.0
      %v526 = vmax.f32 %v489, 0.0
      %v527 = vmax.f32 %v443, 0.0
      %v528 = vmax.f32 %v492, 0.0
      %v529 = vmax.f32 %v445, 0.0
      %v530 = vmax.f32 %v494, 0.0
      %v531 = vmax.f32 %v448, 0.0
      %v532 = vmax.f32 %v497, 0.0
      %v533 = vmax.f32 %v450, 0.0
      %v534 = vmax.f32 %v499, 0.0
      %v535 = vmax.f32 %v453, 0.0
      %v536 = vmax.f32 %v502, 0.0
      %v537 = vmax.f32 %v455, 0.0
      %v538 = vmax.f32 %v504, 0.0
      %v539 = vmax.f32 %v458, 0.0
      %v540 = vmax.f32 %v507, 0.0
      %v541 = vmax.f32 %v460, 0.0
      %v542 = vmax.f32 %v509, 0.0
      %v543 = vpack.c.bf16 %v512, %v511
      %v544 = vpack.c.bf16 %v514, %v513
      %v545 = vpack.c.bf16 %v516, %v515
      %v546 = vpack.c.bf16 %v518, %v517
      %v547 = vpack.c.bf16 %v520, %v519
      %v548 = vpack.c.bf16 %v522, %v521
      %v549 = vpack.c.bf16 %v524, %v523
      %v550 = vpack.c.bf16 %v526, %v525
      %v551 = vpack.c.bf16 %v528, %v527
      %v552 = vpack.c.bf16 %v530, %v529
      %v553 = vpack.c.bf16 %v532, %v531
      %v554 = vpack.c.bf16 %v534, %v533
      %v555 = vpack.c.bf16 %v536, %v535
      %v556 = vpack.c.bf16 %v538, %v537
      %v557 = vpack.c.bf16 %v540, %v539
      %v558 = vpack.c.bf16 %v542, %v541
      %559 = vst [vmem:[%s205] sm:$0xff] %v543
      %560 = vst [vmem:[%s205 + $0x8] sm:$0xff] %v544
      %561 = vst [vmem:[%s205 + $0x10] sm:$0xff] %v545
      %562 = vst [vmem:[%s205 + $0x18] sm:$0xff] %v546
      %563 = vst [vmem:[%s205 + $0x20] sm:$0xff] %v547
      %564 = vst [vmem:[%s205 + $0x28] sm:$0xff] %v548
      %565 = vst [vmem:[%s205 + $0x30] sm:$0xff] %v549
      %566 = vst [vmem:[%s205 + $0x38] sm:$0xff] %v550
      %567 = vst [vmem:[%s205 + $0x40] sm:$0xff] %v551
      %568 = vst [vmem:[%s205 + $0x48] sm:$0xff] %v552
      %569 = vst [vmem:[%s205 + $0x50] sm:$0xff] %v553
      %570 = vst [vmem:[%s205 + $0x58] sm:$0xff] %v554
      %571 = vst [vmem:[%s205 + $0x60] sm:$0xff] %v555
      %572 = vst [vmem:[%s205 + $0x68] sm:$0xff] %v556
      %573 = vst [vmem:[%s205 + $0x70] sm:$0xff] %v557
      %574 = vst [vmem:[%s205 + $0x78] sm:$0xff] %v558
      %vm575 = vcmask 523264
      %v576 = vsel %vm575, %v511, 0.0
      %577 = vadd.xlane.f32.xlu0 %v576
      %v578 = vpop.xlane.xlu0 %577
      %v579 = vsel %vm575, %v513, 0.0
      %580 = vadd.xlane.f32.xlu0 %v579
      %v581 = vpop.xlane.xlu0 %580
      %v582 = vsel %vm575, %v515, 0.0
      %583 = vadd.xlane.f32.xlu0 %v582
      %v584 = vpop.xlane.xlu0 %583
      %v585 = vsel %vm575, %v517, 0.0
      %586 = vadd.xlane.f32.xlu0 %v585
      %v587 = vpop.xlane.xlu0 %586
      %v588 = vsel %vm575, %v519, 0.0
      %589 = vadd.xlane.f32.xlu0 %v588
      %v590 = vpop.xlane.xlu0 %589
      %v591 = vsel %vm575, %v521, 0.0
      %592 = vadd.xlane.f32.xlu0 %v591
      %v593 = vpop.xlane.xlu0 %592
      %v594 = vsel %vm575, %v523, 0.0
      %595 = vadd.xlane.f32.xlu0 %v594
      %v596 = vpop.xlane.xlu0 %595
      %v597 = vsel %vm575, %v525, 0.0
      %598 = vadd.xlane.f32.xlu0 %v597
      %v599 = vpop.xlane.xlu0 %598
      %v600 = vsel %vm575, %v527, 0.0
      %601 = vadd.xlane.f32.xlu0 %v600
      %v602 = vpop.xlane.xlu0 %601
      %v603 = vsel %vm575, %v529, 0.0
      %604 = vadd.xlane.f32.xlu0 %v603
      %v605 = vpop.xlane.xlu0 %604
      %v606 = vsel %vm575, %v531, 0.0
      %607 = vadd.xlane.f32.xlu0 %v606
      %v608 = vpop.xlane.xlu0 %607
      %v609 = vsel %vm575, %v533, 0.0
      %610 = vadd.xlane.f32.xlu0 %v609
      %v611 = vpop.xlane.xlu0 %610
      %v612 = vsel %vm575, %v535, 0.0
      %613 = vadd.xlane.f32.xlu0 %v612
      %v614 = vpop.xlane.xlu0 %613
      %v615 = vsel %vm575, %v537, 0.0
      %616 = vadd.xlane.f32.xlu0 %v615
      %v617 = vpop.xlane.xlu0 %616
      %v618 = vsel %vm575, %v539, 0.0
      %619 = vadd.xlane.f32.xlu0 %v618
      %v620 = vpop.xlane.xlu0 %619
      %v621 = vsel %vm575, %v541, 0.0
      %622 = vadd.xlane.f32.xlu0 %v621
      %v623 = vpop.xlane.xlu0 %622
      %v624 = vrcp.pop 64.0
      %v625 = vmul.f32 64.0, %v624
      %v626 = vsub.f32 1.0, %v625
      %v627 = vmul.f32 %v624, %v626
      %v628 = vadd.f32 %v624, %v627
      %vm629 = vweird.f32 %v624
      %v630 = vsel %vm629, %v624, %v628
      %v631 = vmul.f32 %v578, %v630
      %v632 = vmul.f32 %v581, %v630
      %v633 = vmul.f32 %v584, %v630
      %v634 = vmul.f32 %v587, %v630
      %v635 = vmul.f32 %v590, %v630
      %v636 = vmul.f32 %v593, %v630
      %v637 = vmul.f32 %v596, %v630
      %v638 = vmul.f32 %v599, %v630
      %v639 = vmul.f32 %v602, %v630
      %v640 = vmul.f32 %v605, %v630
      %v641 = vmul.f32 %v608, %v630
      %v642 = vmul.f32 %v611, %v630
      %v643 = vmul.f32 %v614, %v630
      %v644 = vmul.f32 %v617, %v630
      %v645 = vmul.f32 %v620, %v630
      %v646 = vmul.f32 %v623, %v630
      %vm647 = vcmask 7168
      %648 = vst.msk [vmem:[%s210] sm:$0xff] %vm647, %v631
      %649 = vst.msk [vmem:[%s210 + $0x8] sm:$0xff] %vm647, %v632
      %650 = vst.msk [vmem:[%s210 + $0x10] sm:$0xff] %vm647, %v633
      %651 = vst.msk [vmem:[%s210 + $0x18] sm:$0xff] %vm647, %v634
      %652 = vst.msk [vmem:[%s210 + $0x20] sm:$0xff] %vm647, %v635
      %653 = vst.msk [vmem:[%s210 + $0x28] sm:$0xff] %vm647, %v636
      %654 = vst.msk [vmem:[%s210 + $0x30] sm:$0xff] %vm647, %v637
      %655 = vst.msk [vmem:[%s210 + $0x38] sm:$0xff] %vm647, %v638
      %656 = vst.msk [vmem:[%s210 + $0x40] sm:$0xff] %vm647, %v639
      %657 = vst.msk [vmem:[%s210 + $0x48] sm:$0xff] %vm647, %v640
      %658 = vst.msk [vmem:[%s210 + $0x50] sm:$0xff] %vm647, %v641
      %659 = vst.msk [vmem:[%s210 + $0x58] sm:$0xff] %vm647, %v642
      %660 = vst.msk [vmem:[%s210 + $0x60] sm:$0xff] %vm647, %v643
      %661 = vst.msk [vmem:[%s210 + $0x68] sm:$0xff] %vm647, %v644
      %662 = vst.msk [vmem:[%s210 + $0x70] sm:$0xff] %vm647, %v645
      %663 = vst.msk [vmem:[%s210 + $0x78] sm:$0xff] %vm647, %v646
      %680 = vrot.lane.b32.xlu0 %v511, 64
      %v681 = vpop.permute.xlu0 %680
      %682 = vrot.lane.b32.xlu0 %v513, 64
      %v683 = vpop.permute.xlu0 %682
      %684 = vrot.lane.b32.xlu0 %v515, 64
      %v685 = vpop.permute.xlu0 %684
      %686 = vrot.lane.b32.xlu0 %v517, 64
      %v687 = vpop.permute.xlu0 %686
      %688 = vrot.lane.b32.xlu0 %v519, 64
      %v689 = vpop.permute.xlu0 %688
      %690 = vrot.lane.b32.xlu0 %v521, 64
      %v691 = vpop.permute.xlu0 %690
      %692 = vrot.lane.b32.xlu0 %v523, 64
      %v693 = vpop.permute.xlu0 %692
      %694 = vrot.lane.b32.xlu0 %v525, 64
      %v695 = vpop.permute.xlu0 %694
      %696 = vrot.lane.b32.xlu0 %v527, 64
      %v697 = vpop.permute.xlu0 %696
      %698 = vrot.lane.b32.xlu0 %v529, 64
      %v699 = vpop.permute.xlu0 %698
      %700 = vrot.lane.b32.xlu0 %v531, 64
      %v701 = vpop.permute.xlu0 %700
      %702 = vrot.lane.b32.xlu0 %v533, 64
      %v703 = vpop.permute.xlu0 %702
      %704 = vrot.lane.b32.xlu0 %v535, 64
      %v705 = vpop.permute.xlu0 %704
      %706 = vrot.lane.b32.xlu0 %v537, 64
      %v707 = vpop.permute.xlu0 %706
      %708 = vrot.lane.b32.xlu0 %v539, 64
      %v709 = vpop.permute.xlu0 %708
      %710 = vrot.lane.b32.xlu0 %v541, 64
      %v711 = vpop.permute.xlu0 %710
      %v728 = vsel %vm575, %v681, 0.0
      %729 = vadd.xlane.f32.xlu0 %v728
      %v730 = vpop.xlane.xlu0 %729
      %v731 = vsel %vm575, %v683, 0.0
      %732 = vadd.xlane.f32.xlu0 %v731
      %v733 = vpop.xlane.xlu0 %732
      %v734 = vsel %vm575, %v685, 0.0
      %735 = vadd.xlane.f32.xlu0 %v734
      %v736 = vpop.xlane.xlu0 %735
      %v737 = vsel %vm575, %v687, 0.0
      %738 = vadd.xlane.f32.xlu0 %v737
      %v739 = vpop.xlane.xlu0 %738
      %v740 = vsel %vm575, %v689, 0.0
      %741 = vadd.xlane.f32.xlu0 %v740
      %v742 = vpop.xlane.xlu0 %741
      %v743 = vsel %vm575, %v691, 0.0
      %744 = vadd.xlane.f32.xlu0 %v743
      %v745 = vpop.xlane.xlu0 %744
      %v746 = vsel %vm575, %v693, 0.0
      %747 = vadd.xlane.f32.xlu0 %v746
      %v748 = vpop.xlane.xlu0 %747
      %v749 = vsel %vm575, %v695, 0.0
      %750 = vadd.xlane.f32.xlu0 %v749
      %v751 = vpop.xlane.xlu0 %750
      %v752 = vsel %vm575, %v697, 0.0
      %753 = vadd.xlane.f32.xlu0 %v752
      %v754 = vpop.xlane.xlu0 %753
      %v755 = vsel %vm575, %v699, 0.0
      %756 = vadd.xlane.f32.xlu0 %v755
      %v757 = vpop.xlane.xlu0 %756
      %v758 = vsel %vm575, %v701, 0.0
      %759 = vadd.xlane.f32.xlu0 %v758
      %v760 = vpop.xlane.xlu0 %759
      %v761 = vsel %vm575, %v703, 0.0
      %762 = vadd.xlane.f32.xlu0 %v761
      %v763 = vpop.xlane.xlu0 %762
      %v764 = vsel %vm575, %v705, 0.0
      %765 = vadd.xlane.f32.xlu0 %v764
      %v766 = vpop.xlane.xlu0 %765
      %v767 = vsel %vm575, %v707, 0.0
      %768 = vadd.xlane.f32.xlu0 %v767
      %v769 = vpop.xlane.xlu0 %768
      %v770 = vsel %vm575, %v709, 0.0
      %771 = vadd.xlane.f32.xlu0 %v770
      %v772 = vpop.xlane.xlu0 %771
      %v773 = vsel %vm575, %v711, 0.0
      %774 = vadd.xlane.f32.xlu0 %v773
      %v775 = vpop.xlane.xlu0 %774
      %v776 = vmul.f32 %v730, %v630
      %v777 = vmul.f32 %v733, %v630
      %v778 = vmul.f32 %v736, %v630
      %v779 = vmul.f32 %v739, %v630
      %v780 = vmul.f32 %v742, %v630
      %v781 = vmul.f32 %v745, %v630
      %v782 = vmul.f32 %v748, %v630
      %v783 = vmul.f32 %v751, %v630
      %v784 = vmul.f32 %v754, %v630
      %v785 = vmul.f32 %v757, %v630
      %v786 = vmul.f32 %v760, %v630
      %v787 = vmul.f32 %v763, %v630
      %v788 = vmul.f32 %v766, %v630
      %v789 = vmul.f32 %v769, %v630
      %v790 = vmul.f32 %v772, %v630
      %v791 = vmul.f32 %v775, %v630
      %vm792 = vcmask 15368
      %793 = vst.msk [vmem:[%s210] sm:$0xff] %vm792, %v776
      %794 = vst.msk [vmem:[%s210 + $0x8] sm:$0xff] %vm792, %v777
      %795 = vst.msk [vmem:[%s210 + $0x10] sm:$0xff] %vm792, %v778
      %796 = vst.msk [vmem:[%s210 + $0x18] sm:$0xff] %vm792, %v779
      %797 = vst.msk [vmem:[%s210 + $0x20] sm:$0xff] %vm792, %v780
      %798 = vst.msk [vmem:[%s210 + $0x28] sm:$0xff] %vm792, %v781
      %799 = vst.msk [vmem:[%s210 + $0x30] sm:$0xff] %vm792, %v782
      %800 = vst.msk [vmem:[%s210 + $0x38] sm:$0xff] %vm792, %v783
      %801 = vst.msk [vmem:[%s210 + $0x40] sm:$0xff] %vm792, %v784
      %802 = vst.msk [vmem:[%s210 + $0x48] sm:$0xff] %vm792, %v785
      %803 = vst.msk [vmem:[%s210 + $0x50] sm:$0xff] %vm792, %v786
      %804 = vst.msk [vmem:[%s210 + $0x58] sm:$0xff] %vm792, %v787
      %805 = vst.msk [vmem:[%s210 + $0x60] sm:$0xff] %vm792, %v788
      %806 = vst.msk [vmem:[%s210 + $0x68] sm:$0xff] %vm792, %v789
      %807 = vst.msk [vmem:[%s210 + $0x70] sm:$0xff] %vm792, %v790
      %808 = vst.msk [vmem:[%s210 + $0x78] sm:$0xff] %vm792, %v791
      %v809 = vsel %vm575, %v512, 0.0
      %810 = vadd.xlane.f32.xlu0 %v809
      %v811 = vpop.xlane.xlu0 %810
      %v812 = vsel %vm575, %v514, 0.0
      %813 = vadd.xlane.f32.xlu0 %v812
      %v814 = vpop.xlane.xlu0 %813
      %v815 = vsel %vm575, %v516, 0.0
      %816 = vadd.xlane.f32.xlu0 %v815
      %v817 = vpop.xlane.xlu0 %816
      %v818 = vsel %vm575, %v518, 0.0
      %819 = vadd.xlane.f32.xlu0 %v818
      %v820 = vpop.xlane.xlu0 %819
      %v821 = vsel %vm575, %v520, 0.0
      %822 = vadd.xlane.f32.xlu0 %v821
      %v823 = vpop.xlane.xlu0 %822
      %v824 = vsel %vm575, %v522, 0.0
      %825 = vadd.xlane.f32.xlu0 %v824
      %v826 = vpop.xlane.xlu0 %825
      %v827 = vsel %vm575, %v524, 0.0
      %828 = vadd.xlane.f32.xlu0 %v827
      %v829 = vpop.xlane.xlu0 %828
      %v830 = vsel %vm575, %v526, 0.0
      %831 = vadd.xlane.f32.xlu0 %v830
      %v832 = vpop.xlane.xlu0 %831
      %v833 = vsel %vm575, %v528, 0.0
      %834 = vadd.xlane.f32.xlu0 %v833
      %v835 = vpop.xlane.xlu0 %834
      %v836 = vsel %vm575, %v530, 0.0
      %837 = vadd.xlane.f32.xlu0 %v836
      %v838 = vpop.xlane.xlu0 %837
      %v839 = vsel %vm575, %v532, 0.0
      %840 = vadd.xlane.f32.xlu0 %v839
      %v841 = vpop.xlane.xlu0 %840
      %v842 = vsel %vm575, %v534, 0.0
      %843 = vadd.xlane.f32.xlu0 %v842
      %v844 = vpop.xlane.xlu0 %843
      %v845 = vsel %vm575, %v536, 0.0
      %846 = vadd.xlane.f32.xlu0 %v845
      %v847 = vpop.xlane.xlu0 %846
      %v848 = vsel %vm575, %v538, 0.0
      %849 = vadd.xlane.f32.xlu0 %v848
      %v850 = vpop.xlane.xlu0 %849
      %v851 = vsel %vm575, %v540, 0.0
      %852 = vadd.xlane.f32.xlu0 %v851
      %v853 = vpop.xlane.xlu0 %852
      %v854 = vsel %vm575, %v542, 0.0
      %855 = vadd.xlane.f32.xlu0 %v854
      %v856 = vpop.xlane.xlu0 %855
      %v857 = vmul.f32 %v811, %v630
      %v858 = vmul.f32 %v814, %v630
      %v859 = vmul.f32 %v817, %v630
      %v860 = vmul.f32 %v820, %v630
      %v861 = vmul.f32 %v823, %v630
      %v862 = vmul.f32 %v826, %v630
      %v863 = vmul.f32 %v829, %v630
      %v864 = vmul.f32 %v832, %v630
      %v865 = vmul.f32 %v835, %v630
      %v866 = vmul.f32 %v838, %v630
      %v867 = vmul.f32 %v841, %v630
      %v868 = vmul.f32 %v844, %v630
      %v869 = vmul.f32 %v847, %v630
      %v870 = vmul.f32 %v850, %v630
      %v871 = vmul.f32 %v853, %v630
      %v872 = vmul.f32 %v856, %v630
      %vm873 = vcmask 23568
      %874 = vst.msk [vmem:[%s210] sm:$0xff] %vm873, %v857
      %875 = vst.msk [vmem:[%s210 + $0x8] sm:$0xff] %vm873, %v858
      %876 = vst.msk [vmem:[%s210 + $0x10] sm:$0xff] %vm873, %v859
      %877 = vst.msk [vmem:[%s210 + $0x18] sm:$0xff] %vm873, %v860
      %878 = vst.msk [vmem:[%s210 + $0x20] sm:$0xff] %vm873, %v861
      %879 = vst.msk [vmem:[%s210 + $0x28] sm:$0xff] %vm873, %v862
      %880 = vst.msk [vmem:[%s210 + $0x30] sm:$0xff] %vm873, %v863
      %881 = vst.msk [vmem:[%s210 + $0x38] sm:$0xff] %vm873, %v864
      %882 = vst.msk [vmem:[%s210 + $0x40] sm:$0xff] %vm873, %v865
      %883 = vst.msk [vmem:[%s210 + $0x48] sm:$0xff] %vm873, %v866
      %884 = vst.msk [vmem:[%s210 + $0x50] sm:$0xff] %vm873, %v867
      %885 = vst.msk [vmem:[%s210 + $0x58] sm:$0xff] %vm873, %v868
      %886 = vst.msk [vmem:[%s210 + $0x60] sm:$0xff] %vm873, %v869
      %887 = vst.msk [vmem:[%s210 + $0x68] sm:$0xff] %vm873, %v870
      %888 = vst.msk [vmem:[%s210 + $0x70] sm:$0xff] %vm873, %v871
      %889 = vst.msk [vmem:[%s210 + $0x78] sm:$0xff] %vm873, %v872
      %906 = vrot.lane.b32.xlu0 %v512, 64
      %v907 = vpop.permute.xlu0 %906
      %908 = vrot.lane.b32.xlu0 %v514, 64
      %v909 = vpop.permute.xlu0 %908
      %910 = vrot.lane.b32.xlu0 %v516, 64
      %v911 = vpop.permute.xlu0 %910
      %912 = vrot.lane.b32.xlu0 %v518, 64
      %v913 = vpop.permute.xlu0 %912
      %914 = vrot.lane.b32.xlu0 %v520, 64
      %v915 = vpop.permute.xlu0 %914
      %916 = vrot.lane.b32.xlu0 %v522, 64
      %v917 = vpop.permute.xlu0 %916
      %918 = vrot.lane.b32.xlu0 %v524, 64
      %v919 = vpop.permute.xlu0 %918
      %920 = vrot.lane.b32.xlu0 %v526, 64
      %v921 = vpop.permute.xlu0 %920
      %922 = vrot.lane.b32.xlu0 %v528, 64
      %v923 = vpop.permute.xlu0 %922
      %924 = vrot.lane.b32.xlu0 %v530, 64
      %v925 = vpop.permute.xlu0 %924
      %926 = vrot.lane.b32.xlu0 %v532, 64
      %v927 = vpop.permute.xlu0 %926
      %928 = vrot.lane.b32.xlu0 %v534, 64
      %v929 = vpop.permute.xlu0 %928
      %930 = vrot.lane.b32.xlu0 %v536, 64
      %v931 = vpop.permute.xlu0 %930
      %932 = vrot.lane.b32.xlu0 %v538, 64
      %v933 = vpop.permute.xlu0 %932
      %934 = vrot.lane.b32.xlu0 %v540, 64
      %v935 = vpop.permute.xlu0 %934
      %936 = vrot.lane.b32.xlu0 %v542, 64
      %v937 = vpop.permute.xlu0 %936
      %v954 = vsel %vm575, %v907, 0.0
      %955 = vadd.xlane.f32.xlu0 %v954
      %v956 = vpop.xlane.xlu0 %955
      %v957 = vsel %vm575, %v909, 0.0
      %958 = vadd.xlane.f32.xlu0 %v957
      %v959 = vpop.xlane.xlu0 %958
      %v960 = vsel %vm575, %v911, 0.0
      %961 = vadd.xlane.f32.xlu0 %v960
      %v962 = vpop.xlane.xlu0 %961
      %v963 = vsel %vm575, %v913, 0.0
      %964 = vadd.xlane.f32.xlu0 %v963
      %v965 = vpop.xlane.xlu0 %964
      %v966 = vsel %vm575, %v915, 0.0
      %967 = vadd.xlane.f32.xlu0 %v966
      %v968 = vpop.xlane.xlu0 %967
      %v969 = vsel %vm575, %v917, 0.0
      %970 = vadd.xlane.f32.xlu0 %v969
      %v971 = vpop.xlane.xlu0 %970
      %v972 = vsel %vm575, %v919, 0.0
      %973 = vadd.xlane.f32.xlu0 %v972
      %v974 = vpop.xlane.xlu0 %973
      %v975 = vsel %vm575, %v921, 0.0
      %976 = vadd.xlane.f32.xlu0 %v975
      %v977 = vpop.xlane.xlu0 %976
      %v978 = vsel %vm575, %v923, 0.0
      %979 = vadd.xlane.f32.xlu0 %v978
      %v980 = vpop.xlane.xlu0 %979
      %v981 = vsel %vm575, %v925, 0.0
      %982 = vadd.xlane.f32.xlu0 %v981
      %v983 = vpop.xlane.xlu0 %982
      %v984 = vsel %vm575, %v927, 0.0
      %985 = vadd.xlane.f32.xlu0 %v984
      %v986 = vpop.xlane.xlu0 %985
      %v987 = vsel %vm575, %v929, 0.0
      %988 = vadd.xlane.f32.xlu0 %v987
      %v989 = vpop.xlane.xlu0 %988
      %v990 = vsel %vm575, %v931, 0.0
      %991 = vadd.xlane.f32.xlu0 %v990
      %v992 = vpop.xlane.xlu0 %991
      %v993 = vsel %vm575, %v933, 0.0
      %994 = vadd.xlane.f32.xlu0 %v993
      %v995 = vpop.xlane.xlu0 %994
      %v996 = vsel %vm575, %v935, 0.0
      %997 = vadd.xlane.f32.xlu0 %v996
      %v998 = vpop.xlane.xlu0 %997
      %v999 = vsel %vm575, %v937, 0.0
      %1000 = vadd.xlane.f32.xlu0 %v999
      %v1001 = vpop.xlane.xlu0 %1000
      %v1002 = vmul.f32 %v956, %v630
      %v1003 = vmul.f32 %v959, %v630
      %v1004 = vmul.f32 %v962, %v630
      %v1005 = vmul.f32 %v965, %v630
      %v1006 = vmul.f32 %v968, %v630
      %v1007 = vmul.f32 %v971, %v630
      %v1008 = vmul.f32 %v974, %v630
      %v1009 = vmul.f32 %v977, %v630
      %v1010 = vmul.f32 %v980, %v630
      %v1011 = vmul.f32 %v983, %v630
      %v1012 = vmul.f32 %v986, %v630
      %v1013 = vmul.f32 %v989, %v630
      %v1014 = vmul.f32 %v992, %v630
      %v1015 = vmul.f32 %v995, %v630
      %v1016 = vmul.f32 %v998, %v630
      %v1017 = vmul.f32 %v1001, %v630
      %vm1018 = vcmask 31768
      %1019 = vst.msk [vmem:[%s210] sm:$0xff] %vm1018, %v1002
      %1020 = vst.msk [vmem:[%s210 + $0x8] sm:$0xff] %vm1018, %v1003
      %1021 = vst.msk [vmem:[%s210 + $0x10] sm:$0xff] %vm1018, %v1004
      %1022 = vst.msk [vmem:[%s210 + $0x18] sm:$0xff] %vm1018, %v1005
      %1023 = vst.msk [vmem:[%s210 + $0x20] sm:$0xff] %vm1018, %v1006
      %1024 = vst.msk [vmem:[%s210 + $0x28] sm:$0xff] %vm1018, %v1007
      %1025 = vst.msk [vmem:[%s210 + $0x30] sm:$0xff] %vm1018, %v1008
      %1026 = vst.msk [vmem:[%s210 + $0x38] sm:$0xff] %vm1018, %v1009
      %1027 = vst.msk [vmem:[%s210 + $0x40] sm:$0xff] %vm1018, %v1010
      %1028 = vst.msk [vmem:[%s210 + $0x48] sm:$0xff] %vm1018, %v1011
      %1029 = vst.msk [vmem:[%s210 + $0x50] sm:$0xff] %vm1018, %v1012
      %1030 = vst.msk [vmem:[%s210 + $0x58] sm:$0xff] %vm1018, %v1013
      %1031 = vst.msk [vmem:[%s210 + $0x60] sm:$0xff] %vm1018, %v1014
      %1032 = vst.msk [vmem:[%s210 + $0x68] sm:$0xff] %vm1018, %v1015
      %1033 = vst.msk [vmem:[%s210 + $0x70] sm:$0xff] %vm1018, %v1016
      %1034 = vst.msk [vmem:[%s210 + $0x78] sm:$0xff] %vm1018, %v1017
      %p1035 = scmp.lt.s32.totalorder %s16, 1
      %s1036 = scalar_select %p1035, %s16, 1
      %s1037 = smul.addr %s1036, 32
      %s1038 = smul.addr %s1037, 4
      %s1039 = scalar_lea.vmem %s3, %s1038
      %p1040 = scmp.lt.s32.totalorder %s16, 1
      %s1041 = scalar_select %p1040, %s16, 1
      %s1042 = smul.addr %s1041, 16
      %s1043 = smul.addr %s1042, 8
      %s1044 = scalar_lea.vmem %s4, %s1043
      // Predicated region
      $region33: #{deepfake_forward.3} parent=31 // pred_check
        %p1045 = pneg %p102
      $region34: #{deepfake_forward.3} parent=31 // pred_check_branch
        %1047 = sbr.rel (%p1045) target = $region36
      $region35: #{deepfake_forward.3} parent=31 // pred_region
        _
      $region36: #{deepfake_forward.3} parent=31 // pred_fallthru
        _
      // Predicated region
      $region37: #{deepfake_forward.3} parent=31 // pred_check
        %p1048 = pneg %p128
      $region38: #{deepfake_forward.3} parent=31 // pred_check_branch
        %1050 = sbr.rel (%p1048) target = $region40
      $region39: #{deepfake_forward.3} parent=31 // pred_region
        _
      $region40: #{deepfake_forward.3} parent=31 // pred_fallthru
        _
    $region32: #{deepfake_forward.3} parent=5 // pred_fallthru
      _
    %p1051 = scmp.le.s32.totalorder 2, %s11
    // Predicated region
    $region41: #{deepfake_forward.3} parent=5 // pred_check
      %p1052 = pneg %p1051
    $region42: #{deepfake_forward.3} parent=5 // pred_check_branch
      %1054 = sbr.rel (%p1052) target = $region44
    $region43: #{deepfake_forward.3} parent=5 // pred_region
      %s1055 = ssub.s32 %s11, 2
      // Predicated region
      $region45: #{deepfake_forward.3} parent=43 // pred_check
        %p1056 = pneg %p108
      $region46: #{deepfake_forward.3} parent=43 // pred_check_branch
        %1058 = sbr.rel (%p1056) target = $region48
      $region47: #{deepfake_forward.3} parent=43 // pred_region
        %p1059 = scmp.lt.s32.totalorder %s17, 1
        %s1060 = scalar_select %p1059, %s17, 1
        %s1061 = smul.addr %s1060, 32
        %s1062 = smul.addr %s1061, 4
        %s1063 = scalar_lea.vmem %s3, %s1062
      $region48: #{deepfake_forward.3} parent=43 // pred_fallthru
        _
      // Predicated region
      $region49: #{deepfake_forward.3} parent=43 // pred_check
        %p1064 = pneg %p134
      $region50: #{deepfake_forward.3} parent=43 // pred_check_branch
        %1066 = sbr.rel (%p1064) target = $region52
      $region51: #{deepfake_forward.3} parent=43 // pred_region
        %p1067 = scmp.lt.s32.totalorder %s17, 1
        %s1068 = scalar_select %p1067, %s17, 1
        %s1069 = smul.addr %s1068, 16
        %s1070 = smul.addr %s1069, 8
        %s1071 = scalar_lea.vmem %s4, %s1070
      $region52: #{deepfake_forward.3} parent=43 // pred_fallthru
        _
    $region44: #{deepfake_forward.3} parent=5 // pred_fallthru
      _
  $region6: #{deepfake_forward.3} parent=0 // loop_footer
    %s15 = sadd.s32 1, %s11
  $region7: #{deepfake_forward.3} parent=0 // loop_footer_branch
    %10 = sbr.rel target = $region3
  $region8: #{deepfake_forward.3} parent=0 // loop_exit
    _

// kernel: deepfake_forward.5
$region0: #{deepfake_forward.5}
  #allocation0 [shape = 'u32[]', space=smem, size = 0x4, offset = 0x4, fixed_abs, tag = 'smem constant byte address 0x4 - core index']
  #allocation1 [shape = 'u32[72,128]{1,0:T(1,128)}', space=vmem, size = 0x9000, scoped, tag = 'internal scratch']
  #allocation2 [shape = 'f32[2,128]{1,0:T(2,128)}', space=vmem, size = 0x400, scoped, tag = 'scratch operand']
  %s0 = inlined_call_operand.vmem [shape: f32[2,4,512], index: 0, kind: input, shape index: {}]
  %s1 = inlined_call_operand.vmem [shape: bf16[128,512], index: 1, kind: input, shape index: {}]
  %s2 = inlined_call_operand.vmem [shape: bf16[128,128], index: 2, kind: input, shape index: {}]
  %s3 = inlined_call_operand.vmem [shape: f32[1,128], index: 3, kind: input, shape index: {}]
  %s4 = inlined_call_operand.hbm [shape: f32[2,128], index: 4, kind: output, shape index: {}]
  %s5 = sld [smem:[#allocation0]]
  $region26: #{deepfake_forward.5} parent=0
    _
  %s7 = ssub.s32 1, %s5
  %s8 = scalar_select 0, %s7, %s5
  $region1: #{deepfake_forward.5} parent=0
    #allocation3 [shape = 'u8[1024]{0}', space=vmem, size = 0x400, scoped, tag = 'output window, operand 0, single buffered']
    #allocation4 [shape = 's32[1]{0}', space=sflag, size = 0x4, scoped, tag = 'scoped memory for deepfake_forward.5']
    %9 = vsyncpa [#allocation4], 0
    // Predicated region
    $region2: #{deepfake_forward.5} parent=1 // pred_check
      _
    $region3: #{deepfake_forward.5} parent=1 // pred_check_branch
      %11 = sbr.rel (0) target = $region5
    $region4: #{deepfake_forward.5} parent=1 // pred_region
      _
    $region5: #{deepfake_forward.5} parent=1 // pred_fallthru
      _
    // Predicated region
    $region6: #{deepfake_forward.5} parent=1 // pred_check
      _
    $region7: #{deepfake_forward.5} parent=1 // pred_check_branch
      %13 = sbr.rel (0) target = $region9
    $region8: #{deepfake_forward.5} parent=1 // pred_region
      _
    $region9: #{deepfake_forward.5} parent=1 // pred_fallthru
      _
    // Predicated region
    $region10: #{deepfake_forward.5} parent=1 // pred_check
      _
    $region11: #{deepfake_forward.5} parent=1 // pred_check_branch
      %15 = sbr.rel (0) target = $region13
    $region12: #{deepfake_forward.5} parent=1 // pred_region
      _
    $region13: #{deepfake_forward.5} parent=1 // pred_fallthru
      _
    // Predicated region
    $region14: #{deepfake_forward.5} parent=1 // pred_check
      _
    $region15: #{deepfake_forward.5} parent=1 // pred_check_branch
      %17 = sbr.rel (0) target = $region17
    $region16: #{deepfake_forward.5} parent=1 // pred_region
      _
    $region17: #{deepfake_forward.5} parent=1 // pred_fallthru
      _
    %v19 = vld [vmem:[%s1] sm:$0xff]
    %v20 = vld [vmem:[%s1 + $0x8] sm:$0xff]
    %v21 = vld [vmem:[%s1 + $0x10] sm:$0xff]
    %v22 = vld [vmem:[%s1 + $0x18] sm:$0xff]
    %v23 = vld [vmem:[%s1 + $0x20] sm:$0xff]
    %v24 = vld [vmem:[%s1 + $0x28] sm:$0xff]
    %v25 = vld [vmem:[%s1 + $0x30] sm:$0xff]
    %v26 = vld [vmem:[%s1 + $0x38] sm:$0xff]
    %v27 = vld [vmem:[%s1 + $0x40] sm:$0xff]
    %v28 = vld [vmem:[%s1 + $0x48] sm:$0xff]
    %v29 = vld [vmem:[%s1 + $0x50] sm:$0xff]
    %v30 = vld [vmem:[%s1 + $0x58] sm:$0xff]
    %v31 = vld [vmem:[%s1 + $0x60] sm:$0xff]
    %v32 = vld [vmem:[%s1 + $0x68] sm:$0xff]
    %v33 = vld [vmem:[%s1 + $0x70] sm:$0xff]
    %v34 = vld [vmem:[%s1 + $0x78] sm:$0xff]
    %v35 = vld [vmem:[%s1 + $0x80] sm:$0xff]
    %v36 = vld [vmem:[%s1 + $0x88] sm:$0xff]
    %v37 = vld [vmem:[%s1 + $0x90] sm:$0xff]
    %v38 = vld [vmem:[%s1 + $0x98] sm:$0xff]
    %v39 = vld [vmem:[%s1 + $0xa0] sm:$0xff]
    %v40 = vld [vmem:[%s1 + $0xa8] sm:$0xff]
    %v41 = vld [vmem:[%s1 + $0xb0] sm:$0xff]
    %v42 = vld [vmem:[%s1 + $0xb8] sm:$0xff]
    %v43 = vld [vmem:[%s1 + $0xc0] sm:$0xff]
    %v44 = vld [vmem:[%s1 + $0xc8] sm:$0xff]
    %v45 = vld [vmem:[%s1 + $0xd0] sm:$0xff]
    %v46 = vld [vmem:[%s1 + $0xd8] sm:$0xff]
    %v47 = vld [vmem:[%s1 + $0xe0] sm:$0xff]
    %v48 = vld [vmem:[%s1 + $0xe8] sm:$0xff]
    %v49 = vld [vmem:[%s1 + $0xf0] sm:$0xff]
    %v50 = vld [vmem:[%s1 + $0xf8] sm:$0xff]
    %v51 = vld [vmem:[%s0] sm:$0xff]
    %v52 = vld [vmem:[%s0 + $0x8] sm:$0xff]
    %v85 = vunpack.c.l.b16 %v19
    %v86 = vunpack.c.h.b16 %v19
    %v87 = vunpack.c.l.b16 %v20
    %v88 = vunpack.c.h.b16 %v20
    %v89 = vunpack.c.l.b16 %v21
    %v90 = vunpack.c.h.b16 %v21
    %v91 = vunpack.c.l.b16 %v22
    %v92 = vunpack.c.h.b16 %v22
    %v93 = vunpack.c.l.b16 %v23
    %v94 = vunpack.c.h.b16 %v23
    %v95 = vunpack.c.l.b16 %v24
    %v96 = vunpack.c.h.b16 %v24
    %v97 = vunpack.c.l.b16 %v25
    %v98 = vunpack.c.h.b16 %v25
    %v99 = vunpack.c.l.b16 %v26
    %v100 = vunpack.c.h.b16 %v26
    %v101 = vunpack.c.l.b16 %v27
    %v102 = vunpack.c.h.b16 %v27
    %v103 = vunpack.c.l.b16 %v28
    %v104 = vunpack.c.h.b16 %v28
    %v105 = vunpack.c.l.b16 %v29
    %v106 = vunpack.c.h.b16 %v29
    %v107 = vunpack.c.l.b16 %v30
    %v108 = vunpack.c.h.b16 %v30
    %v109 = vunpack.c.l.b16 %v31
    %v110 = vunpack.c.h.b16 %v31
    %v111 = vunpack.c.l.b16 %v32
    %v112 = vunpack.c.h.b16 %v32
    %v113 = vunpack.c.l.b16 %v33
    %v114 = vunpack.c.h.b16 %v33
    %v115 = vunpack.c.l.b16 %v34
    %v116 = vunpack.c.h.b16 %v34
    %v117 = vunpack.c.l.b16 %v35
    %v118 = vunpack.c.h.b16 %v35
    %v119 = vunpack.c.l.b16 %v36
    %v120 = vunpack.c.h.b16 %v36
    %v121 = vunpack.c.l.b16 %v37
    %v122 = vunpack.c.h.b16 %v37
    %v123 = vunpack.c.l.b16 %v38
    %v124 = vunpack.c.h.b16 %v38
    %v125 = vunpack.c.l.b16 %v39
    %v126 = vunpack.c.h.b16 %v39
    %v127 = vunpack.c.l.b16 %v40
    %v128 = vunpack.c.h.b16 %v40
    %v129 = vunpack.c.l.b16 %v41
    %v130 = vunpack.c.h.b16 %v41
    %v131 = vunpack.c.l.b16 %v42
    %v132 = vunpack.c.h.b16 %v42
    %v133 = vunpack.c.l.b16 %v43
    %v134 = vunpack.c.h.b16 %v43
    %v135 = vunpack.c.l.b16 %v44
    %v136 = vunpack.c.h.b16 %v44
    %v137 = vunpack.c.l.b16 %v45
    %v138 = vunpack.c.h.b16 %v45
    %v139 = vunpack.c.l.b16 %v46
    %v140 = vunpack.c.h.b16 %v46
    %v141 = vunpack.c.l.b16 %v47
    %v142 = vunpack.c.h.b16 %v47
    %v143 = vunpack.c.l.b16 %v48
    %v144 = vunpack.c.h.b16 %v48
    %v145 = vunpack.c.l.b16 %v49
    %v146 = vunpack.c.h.b16 %v49
    %v147 = vunpack.c.l.b16 %v50
    %v148 = vunpack.c.h.b16 %v50
    %v149 = vpack.c.b16 %v89, %v85
    %v150 = vpack.c.b16 %v90, %v86
    %v151 = vpack.c.b16 %v91, %v87
    %v152 = vpack.c.b16 %v92, %v88
    %v153 = vpack.c.b16 %v97, %v93
    %v154 = vpack.c.b16 %v98, %v94
    %v155 = vpack.c.b16 %v99, %v95
    %v156 = vpack.c.b16 %v100, %v96
    %v157 = vpack.c.b16 %v105, %v101
    %v158 = vpack.c.b16 %v106, %v102
    %v159 = vpack.c.b16 %v107, %v103
    %v160 = vpack.c.b16 %v108, %v104
    %v161 = vpack.c.b16 %v113, %v109
    %v162 = vpack.c.b16 %v114, %v110
    %v163 = vpack.c.b16 %v115, %v111
    %v164 = vpack.c.b16 %v116, %v112
    %v165 = vpack.c.b16 %v121, %v117
    %v166 = vpack.c.b16 %v122, %v118
    %v167 = vpack.c.b16 %v123, %v119
    %v168 = vpack.c.b16 %v124, %v120
    %v169 = vpack.c.b16 %v129, %v125
    %v170 = vpack.c.b16 %v130, %v126
    %v171 = vpack.c.b16 %v131, %v127
    %v172 = vpack.c.b16 %v132, %v128
    %v173 = vpack.c.b16 %v137, %v133
    %v174 = vpack.c.b16 %v138, %v134
    %v175 = vpack.c.b16 %v139, %v135
    %v176 = vpack.c.b16 %v140, %v136
    %v177 = vpack.c.b16 %v145, %v141
    %v178 = vpack.c.b16 %v146, %v142
    %v179 = vpack.c.b16 %v147, %v143
    %v180 = vpack.c.b16 %v148, %v144
    %213 = vmatpush.bf16.msra.mxu0 %v177
    %214 = vmatpush.bf16.msra.mxu0 %v173
    %215 = vmatpush.bf16.msra.mxu0 %v169
    %216 = vmatpush.bf16.msra.mxu0 %v165
    %217 = vmatpush.bf16.msra.mxu0 %v161
    %218 = vmatpush.bf16.msra.mxu0 %v157
    %219 = vmatpush.bf16.msra.mxu0 %v153
    %220 = vmatpush.bf16.msra.mxu0 %v149
    %221 = vmatmul.bf16.gmra.mxu0 0
    %v222 = vpop.f32.mrf.mxu0
    %v223 = vadd.f32 0.0, %v222
    %v224 = vpop.f32.mrf.mxu0
    %225 = vdwg.mxu0
    %226 = vmatpush.bf16.msra.mxu0 %v178
    %227 = vmatpush.bf16.msra.mxu0 %v174
    %228 = vmatpush.bf16.msra.mxu0 %v170
    %229 = vmatpush.bf16.msra.mxu0 %v166
    %230 = vmatpush.bf16.msra.mxu0 %v162
    %231 = vmatpush.bf16.msra.mxu0 %v158
    %232 = vmatpush.bf16.msra.mxu0 %v154
    %233 = vmatpush.bf16.msra.mxu0 %v150
    %234 = vmatmul.bf16.gmra.mxu0 0
    %v235 = vpop.f32.mrf.mxu0
    %v236 = vadd.f32 0.0, %v235
    %v237 = vpop.f32.mrf.mxu0
    %238 = vdwg.mxu0
    %239 = vmatpush.bf16.msra.mxu0 %v179
    %240 = vmatpush.bf16.msra.mxu0 %v175
    %241 = vmatpush.bf16.msra.mxu0 %v171
    %242 = vmatpush.bf16.msra.mxu0 %v167
    %243 = vmatpush.bf16.msra.mxu0 %v163
    %244 = vmatpush.bf16.msra.mxu0 %v159
    %245 = vmatpush.bf16.msra.mxu0 %v155
    %246 = vmatpush.bf16.msra.mxu0 %v151
    %247 = vmatmul.bf16.gmra.mxu0 0
    %v248 = vpop.f32.mrf.mxu0
    %v249 = vadd.f32 0.0, %v248
    %v250 = vpop.f32.mrf.mxu0
    %251 = vdwg.mxu0
    %252 = vmatpush.bf16.msra.mxu0 %v180
    %253 = vmatpush.bf16.msra.mxu0 %v176
    %254 = vmatpush.bf16.msra.mxu0 %v172
    %255 = vmatpush.bf16.msra.mxu0 %v168
    %256 = vmatpush.bf16.msra.mxu0 %v164
    %257 = vmatpush.bf16.msra.mxu0 %v160
    %258 = vmatpush.bf16.msra.mxu0 %v156
    %259 = vmatpush.bf16.msra.mxu0 %v152
    %260 = vmatmul.bf16.gmra.mxu0 0
    %v261 = vpop.f32.mrf.mxu0
    %v262 = vadd.f32 0.0, %v261
    %v263 = vpop.f32.mrf.mxu0
    %264 = vdwg.mxu0
    %v269 = vrot.slane %v236, 4
    %v270 = vrot.slane %v262, 4
    %vm271 = vcmask 1043456
    %v272 = vsel %vm271, %v223, %v269
    %v273 = vsel %vm271, %v249, %v270
    %v276 = vadd.f32 %v51, %v272
    %v277 = vadd.f32 %v52, %v273
    %v278 = vxor.u32 %v276, 2147483648
    %v279 = vmul.f32 %v278, 1.442695
    %v280 = vpow.pop %v279
    %v281 = vadd.f32 %v280, 1.0
    %v282 = vrcp.pop %v281
    %v283 = vmul.f32 %v281, %v282
    %v284 = vsub.f32 1.0, %v283
    %v285 = vmul.f32 %v282, %v284
    %v286 = vadd.f32 %v282, %v285
    %vm287 = vweird.f32 %v281
    %vm288 = vweird.f32 %v282
    %vm289 = vmor %vm287, %vm288
    %v290 = vsel %vm289, %v282, %v286
    %v291 = vand.u32 2147483647, %v281
    %vm292 = vcmp.eq.f32.partialorder %v291, 8.507059e+37
    %v293 = vand.u32 %v281, 2147483648
    %v294 = vor.u32 1.1754944e-38, %v293
    %v295 = vsel %vm292, %v294, %v290
    %v296 = vmul.f32 1.0, %v295
    %v298 = vrot.slane %v276, 4
    %v300 = vxor.u32 %v298, 2147483648
    %v301 = vmul.f32 %v300, 1.442695
    %v302 = vpow.pop %v301
    %v303 = vadd.f32 %v302, 1.0
    %v304 = vrcp.pop %v303
    %v305 = vmul.f32 %v303, %v304
    %v306 = vsub.f32 1.0, %v305
    %v307 = vmul.f32 %v304, %v306
    %v308 = vadd.f32 %v304, %v307
    %vm309 = vweird.f32 %v303
    %vm310 = vweird.f32 %v304
    %vm311 = vmor %vm309, %vm310
    %v312 = vsel %vm311, %v304, %v308
    %v313 = vand.u32 2147483647, %v303
    %vm314 = vcmp.eq.f32.partialorder %v313, 8.507059e+37
    %v315 = vand.u32 %v303, 2147483648
    %v316 = vor.u32 1.1754944e-38, %v315
    %v317 = vsel %vm314, %v316, %v312
    %v318 = vmul.f32 1.0, %v317
    %v319 = vtanh.pop %v277
    %v321 = vrot.slane %v277, 4
    %v323 = vxor.u32 %v321, 2147483648
    %v324 = vmul.f32 %v323, 1.442695
    %v325 = vpow.pop %v324
    %v326 = vadd.f32 %v325, 1.0
    %v327 = vrcp.pop %v326
    %v328 = vmul.f32 %v326, %v327
    %v329 = vsub.f32 1.0, %v328
    %v330 = vmul.f32 %v327, %v329
    %v331 = vadd.f32 %v327, %v330
    %vm332 = vweird.f32 %v326
    %vm333 = vweird.f32 %v327
    %vm334 = vmor %vm332, %vm333
    %v335 = vsel %vm334, %v327, %v331
    %v336 = vand.u32 2147483647, %v326
    %vm337 = vcmp.eq.f32.partialorder %v336, 8.507059e+37
    %v338 = vand.u32 %v326, 2147483648
    %v339 = vor.u32 1.1754944e-38, %v338
    %v340 = vsel %vm337, %v339, %v335
    %v341 = vmul.f32 1.0, %v340
    %v342 = vmul.f32 %v318, 0.0
    %v343 = vmul.f32 %v296, %v319
    %v344 = vadd.f32 %v342, %v343
    %v345 = vtanh.pop %v344
    %v346 = vmul.f32 %v341, %v345
    %347 = vst [vmem:[#allocation2 - $0x3] sm:$0x8] %v346
    %s348 = scalar_lea.vmem %s0, 16
    %v349 = vld [vmem:[%s348] sm:$0xff]
    %v350 = vld [vmem:[%s348 + $0x8] sm:$0xff]
    %v351 = vpack.c.bf16 %v346, %v346
    %352 = vmatpush.bf16.msra.mxu0 %v177
    %353 = vmatpush.bf16.msra.mxu0 %v173
    %354 = vmatpush.bf16.msra.mxu0 %v169
    %355 = vmatpush.bf16.msra.mxu0 %v165
    %356 = vmatpush.bf16.msra.mxu0 %v161
    %357 = vmatpush.bf16.msra.mxu0 %v157
    %358 = vmatpush.bf16.msra.mxu0 %v153
    %359 = vmatpush.bf16.msra.mxu0 %v149
    %360 = vmatmul.bf16.gmra.mxu0 %v351
    %v361 = vpop.f32.mrf.mxu0
    %v362 = vadd.f32 0.0, %v361
    %v363 = vpop.f32.mrf.mxu0
    %364 = vdwg.mxu0
    %365 = vmatpush.bf16.msra.mxu0 %v178
    %366 = vmatpush.bf16.msra.mxu0 %v174
    %367 = vmatpush.bf16.msra.mxu0 %v170
    %368 = vmatpush.bf16.msra.mxu0 %v166
    %369 = vmatpush.bf16.msra.mxu0 %v162
    %370 = vmatpush.bf16.msra.mxu0 %v158
    %371 = vmatpush.bf16.msra.mxu0 %v154
    %372 = vmatpush.bf16.msra.mxu0 %v150
    %373 = vmatmul.bf16.gmra.mxu0 %v351
    %v374 = vpop.f32.mrf.mxu0
    %v375 = vadd.f32 0.0, %v374
    %v376 = vpop.f32.mrf.mxu0
    %377 = vdwg.mxu0
    %378 = vmatpush.bf16.msra.mxu0 %v179
    %379 = vmatpush.bf16.msra.mxu0 %v175
    %380 = vmatpush.bf16.msra.mxu0 %v171
    %381 = vmatpush.bf16.msra.mxu0 %v167
    %382 = vmatpush.bf16.msra.mxu0 %v163
    %383 = vmatpush.bf16.msra.mxu0 %v159
    %384 = vmatpush.bf16.msra.mxu0 %v155
    %385 = vmatpush.bf16.msra.mxu0 %v151
    %386 = vmatmul.bf16.gmra.mxu0 %v351
    %v387 = vpop.f32.mrf.mxu0
    %v388 = vadd.f32 0.0, %v387
    %v389 = vpop.f32.mrf.mxu0
    %390 = vdwg.mxu0
    %391 = vmatpush.bf16.msra.mxu0 %v180
    %392 = vmatpush.bf16.msra.mxu0 %v176
    %393 = vmatpush.bf16.msra.mxu0 %v172
    %394 = vmatpush.bf16.msra.mxu0 %v168
    %395 = vmatpush.bf16.msra.mxu0 %v164
    %396 = vmatpush.bf16.msra.mxu0 %v160
    %397 = vmatpush.bf16.msra.mxu0 %v156
    %398 = vmatpush.bf16.msra.mxu0 %v152
    %399 = vmatmul.bf16.gmra.mxu0 %v351
    %v400 = vpop.f32.mrf.mxu0
    %v401 = vadd.f32 0.0, %v400
    %v402 = vpop.f32.mrf.mxu0
    %403 = vdwg.mxu0
    %v408 = vrot.slane %v375, 4
    %v409 = vrot.slane %v401, 4
    %v410 = vsel %vm271, %v362, %v408
    %v411 = vsel %vm271, %v388, %v409
    %v414 = vadd.f32 %v349, %v410
    %v415 = vadd.f32 %v350, %v411
    %v416 = vxor.u32 %v414, 2147483648
    %v417 = vmul.f32 %v416, 1.442695
    %v418 = vpow.pop %v417
    %v419 = vadd.f32 %v418, 1.0
    %v420 = vrcp.pop %v419
    %v421 = vmul.f32 %v419, %v420
    %v422 = vsub.f32 1.0, %v421
    %v423 = vmul.f32 %v420, %v422
    %v424 = vadd.f32 %v420, %v423
    %vm425 = vweird.f32 %v419
    %vm426 = vweird.f32 %v420
    %vm427 = vmor %vm425, %vm426
    %v428 = vsel %vm427, %v420, %v424
    %v429 = vand.u32 2147483647, %v419
    %vm430 = vcmp.eq.f32.partialorder %v429, 8.507059e+37
    %v431 = vand.u32 %v419, 2147483648
    %v432 = vor.u32 1.1754944e-38, %v431
    %v433 = vsel %vm430, %v432, %v428
    %v434 = vmul.f32 1.0, %v433
    %v436 = vrot.slane %v414, 4
    %v438 = vxor.u32 %v436, 2147483648
    %v439 = vmul.f32 %v438, 1.442695
    %v440 = vpow.pop %v439
    %v441 = vadd.f32 %v440, 1.0
    %v442 = vrcp.pop %v441
    %v443 = vmul.f32 %v441, %v442
    %v444 = vsub.f32 1.0, %v443
    %v445 = vmul.f32 %v442, %v444
    %v446 = vadd.f32 %v442, %v445
    %vm447 = vweird.f32 %v441
    %vm448 = vweird.f32 %v442
    %vm449 = vmor %vm447, %vm448
    %v450 = vsel %vm449, %v442, %v446
    %v451 = vand.u32 2147483647, %v441
    %vm452 = vcmp.eq.f32.partialorder %v451, 8.507059e+37
    %v453 = vand.u32 %v441, 2147483648
    %v454 = vor.u32 1.1754944e-38, %v453
    %v455 = vsel %vm452, %v454, %v450
    %v456 = vmul.f32 1.0, %v455
    %v457 = vtanh.pop %v415
    %v459 = vrot.slane %v415, 4
    %v461 = vxor.u32 %v459, 2147483648
    %v462 = vmul.f32 %v461, 1.442695
    %v463 = vpow.pop %v462
    %v464 = vadd.f32 %v463, 1.0
    %v465 = vrcp.pop %v464
    %v466 = vmul.f32 %v464, %v465
    %v467 = vsub.f32 1.0, %v466
    %v468 = vmul.f32 %v465, %v467
    %v469 = vadd.f32 %v465, %v468
    %vm470 = vweird.f32 %v464
    %vm471 = vweird.f32 %v465
    %vm472 = vmor %vm470, %vm471
    %v473 = vsel %vm472, %v465, %v469
    %v474 = vand.u32 2147483647, %v464
    %vm475 = vcmp.eq.f32.partialorder %v474, 8.507059e+37
    %v476 = vand.u32 %v464, 2147483648
    %v477 = vor.u32 1.1754944e-38, %v476
    %v478 = vsel %vm475, %v477, %v473
    %v479 = vmul.f32 1.0, %v478
    %v480 = vmul.f32 %v456, %v344
    %v481 = vmul.f32 %v434, %v457
    %v482 = vadd.f32 %v480, %v481
    %v483 = vtanh.pop %v482
    %v484 = vmul.f32 %v479, %v483
    %485 = vst [vmem:[#allocation2 - $0x2] sm:$0x8] %v484
    %v486 = vld [vmem:[#allocation2] sm:$0x3]
    %v487 = vpack.c.bf16 %v486, %v486
    %v488 = vld [vmem:[%s2] sm:$0xf]
    %v489 = vld [vmem:[%s2 + $0x4] sm:$0xf]
    %v490 = vld [vmem:[%s2 + $0x8] sm:$0xf]
    %v491 = vld [vmem:[%s2 + $0xc] sm:$0xf]
    %v492 = vld [vmem:[%s2 + $0x10] sm:$0xf]
    %v493 = vld [vmem:[%s2 + $0x14] sm:$0xf]
    %v494 = vld [vmem:[%s2 + $0x18] sm:$0xf]
    %v495 = vld [vmem:[%s2 + $0x1c] sm:$0xf]
    %v496 = vld [vmem:[%s2 + $0x20] sm:$0xf]
    %v497 = vld [vmem:[%s2 + $0x24] sm:$0xf]
    %v498 = vld [vmem:[%s2 + $0x28] sm:$0xf]
    %v499 = vld [vmem:[%s2 + $0x2c] sm:$0xf]
    %v500 = vld [vmem:[%s2 + $0x30] sm:$0xf]
    %v501 = vld [vmem:[%s2 + $0x34] sm:$0xf]
    %v502 = vld [vmem:[%s2 + $0x38] sm:$0xf]
    %v503 = vld [vmem:[%s2 + $0x3c] sm:$0xf]
    %v504 = vld [vmem:[%s3] sm:$0x1]
    %v506 = vperm.slane %v504, 0
    %v524 = vunpack.c.l.b16 %v488
    %v525 = vunpack.c.l.b16 %v489
    %v526 = vunpack.c.l.b16 %v490
    %v527 = vunpack.c.l.b16 %v491
    %v528 = vunpack.c.l.b16 %v492
    %v529 = vunpack.c.l.b16 %v493
    %v530 = vunpack.c.l.b16 %v494
    %v531 = vunpack.c.l.b16 %v495
    %v532 = vunpack.c.l.b16 %v496
    %v533 = vunpack.c.l.b16 %v497
    %v534 = vunpack.c.l.b16 %v498
    %v535 = vunpack.c.l.b16 %v499
    %v536 = vunpack.c.l.b16 %v500
    %v537 = vunpack.c.l.b16 %v501
    %v538 = vunpack.c.l.b16 %v502
    %v539 = vunpack.c.l.b16 %v503
    %v540 = vpack.c.b16 %v525, %v524
    %v541 = vpack.c.b16 %v527, %v526
    %v542 = vpack.c.b16 %v529, %v528
    %v543 = vpack.c.b16 %v531, %v530
    %v544 = vpack.c.b16 %v533, %v532
    %v545 = vpack.c.b16 %v535, %v534
    %v546 = vpack.c.b16 %v537, %v536
    %v547 = vpack.c.b16 %v539, %v538
    %556 = vmatpush.bf16.msra.mxu0 %v547
    %557 = vmatpush.bf16.msra.mxu0 %v546
    %558 = vmatpush.bf16.msra.mxu0 %v545
    %559 = vmatpush.bf16.msra.mxu0 %v544
    %560 = vmatpush.bf16.msra.mxu0 %v543
    %561 = vmatpush.bf16.msra.mxu0 %v542
    %562 = vmatpush.bf16.msra.mxu0 %v541
    %563 = vmatpush.bf16.msra.mxu0 %v540
    %564 = vmatmul.bf16.gmra.mxu0 %v487
    %v565 = vpop.f32.mrf.mxu0
    %v566 = vadd.f32 %v506, %v565
    %v567 = vpop.f32.mrf.mxu0
    %568 = vdwg.mxu0
    %569 = vst [vmem:[#allocation3] sm:$0x3] %v566
    // Predicated region
    $region18: #{deepfake_forward.5} parent=1 // pred_check
      _
    $region19: #{deepfake_forward.5} parent=1 // pred_check_branch
      %571 = sbr.rel (0) target = $region21
    $region20: #{deepfake_forward.5} parent=1 // pred_region
      %573 = vsyncadd [#allocation4], 0
      %s575 = sshll.u32 [#allocation3], 4
      %s576 = int_to_ptr.vmem [resolvable:$true] %s575
      %s577 = sshll.u32 %s4, 4
      %s578 = int_to_ptr.hbm [resolvable:$true] %s577
      %580 = dma.vmem_to_hbm [thread:$0]  %s576, 32, %s578, [#allocation4]
    $region21: #{deepfake_forward.5} parent=1 // pred_fallthru
      _
    // Predicated region
    $region22: #{deepfake_forward.5} parent=1 // pred_check
      _
    $region23: #{deepfake_forward.5} parent=1 // pred_check_branch
      %582 = sbr.rel (0) target = $region25
    $region24: #{deepfake_forward.5} parent=1 // pred_region
      %584 = dma.done [#allocation4], 32
    $region25: #{deepfake_forward.5} parent=1 // pred_fallthru
      _
    %585 = vsyncpa [#allocation4], 1

</llo_original>
